<compile_context>
chip_gen: v5e
topology: v5e:2x2
jax: 0.10.0
libtpu: 0.0.40
codegen_flags: <defaults>
</compile_context>

<pallas_src>
import jax
import jax.numpy as jnp
from jax.experimental import pallas as pl
from jax.experimental.pallas import tpu as pltpu

STATE_SIZE = 8
HIDDEN = 64
ACTION_SIZE = 4


def _round_up(n, m):
    return (n + m - 1) // m * m


def _qnetwork_kernel(x_ref, w1_ref, b1_ref, w2_ref, b2_ref, w3_ref, b3_ref, o_ref):
    # Fused forward pass on one batch tile; all operands VMEM-resident.
    #   x_ref: (tb, STATE_SIZE)            (natural row-major batch layout)
    #   w*_ref: (in, out), b*_ref: (1, out) float32
    #   o_ref: (tb, ACTION_SIZE) float32
    cdt = w1_ref.dtype  # compute dtype of the dots (f32 or bf16)
    x = x_ref[...]
    h1 = jnp.dot(x, w1_ref[...], preferred_element_type=jnp.float32) + b1_ref[...]
    h1 = jnp.maximum(h1, 0.0)
    h2 = jnp.dot(h1.astype(cdt), w2_ref[...], preferred_element_type=jnp.float32) + b2_ref[...]
    h2 = jnp.maximum(h2, 0.0)
    q = jnp.dot(h2.astype(cdt), w3_ref[...], preferred_element_type=jnp.float32) + b3_ref[...]
    o_ref[...] = q.astype(o_ref.dtype)


def qnetwork_forward(x, params, *, tile_batch=8192, compute_dtype=jnp.float32):
    """Forward pass of QNetwork.

    x: (batch, STATE_SIZE) float32 (or a single (STATE_SIZE,) state).
    params: (w1, b1, w2, b2, w3, b3) in PyTorch nn.Linear convention:
            w_i shaped (out, in), b_i shaped (out,).
    Returns (batch, ACTION_SIZE) float32 (or (ACTION_SIZE,) for a single state).
    """
    if x.ndim == 1:
        return qnetwork_forward(x[None, :], params, tile_batch=tile_batch,
                                compute_dtype=compute_dtype)[0]

    w1, b1, w2, b2, w3, b3 = params
    batch = x.shape[0]

    # Tiny-batch fast path (single-state action selection): kernel launch +
    # tiling overhead dominates here, plain XLA matmuls are lower-latency.
    if batch <= 128:
        h1 = jnp.maximum(x @ w1.T + b1, 0.0)
        h2 = jnp.maximum(h1 @ w2.T + b2, 0.0)
        return h2 @ w3.T + b3

    # ---- Batch-tile selection -------------------------------------------
    # Lane/sublane constraint: keep the tile a multiple of 128 rows.
    tile_batch = _round_up(max(int(tile_batch), 128), 128)
    tb = min(tile_batch, _round_up(batch, 128))
    if batch >= 256:
        # Ensure >= 2 grid steps so the "parallel" axis occupies both
        # TensorCores on v7x (no-op cost on v5e/v6e).
        tb = min(tb, _round_up(pl.cdiv(batch, 2), 128))
    assert tb % 128 == 0
    grid = (pl.cdiv(batch, tb),)  # ragged final block is masked by Pallas

    # ---- Operand prep (tiny; weights are 64x64 at most) ------------------
    cdt = compute_dtype
    xk = x.astype(cdt)
    w1t = w1.T.astype(cdt)                       # (STATE_SIZE, HIDDEN)
    w2t = w2.T.astype(cdt)                       # (HIDDEN, HIDDEN)
    w3t = w3.T.astype(cdt)                       # (HIDDEN, ACTION_SIZE)
    b1r = b1.reshape(1, HIDDEN).astype(jnp.float32)
    b2r = b2.reshape(1, HIDDEN).astype(jnp.float32)
    b3r = b3.reshape(1, ACTION_SIZE).astype(jnp.float32)

    flops = 2 * batch * (STATE_SIZE * HIDDEN + HIDDEN * HIDDEN + HIDDEN * ACTION_SIZE)
    weight_bytes = sum(int(a.size) * a.dtype.itemsize
                       for a in (w1t, b1r, w2t, b2r, w3t, b3r))
    bytes_accessed = (batch * STATE_SIZE * jnp.dtype(cdt).itemsize
                      + batch * ACTION_SIZE * 4 + weight_bytes)

    const2d = lambda i: (0, 0)  # weights/biases: fetched once, VMEM-resident

    out = pl.pallas_call(
        _qnetwork_kernel,
        out_shape=jax.ShapeDtypeStruct((batch, ACTION_SIZE), jnp.float32),
        grid_spec=pltpu.PrefetchScalarGridSpec(
            num_scalar_prefetch=0,
            grid=grid,
            in_specs=[
                pl.BlockSpec((tb, STATE_SIZE), lambda i: (i, 0)),   # x stream
                pl.BlockSpec((STATE_SIZE, HIDDEN), const2d),        # w1^T
                pl.BlockSpec((1, HIDDEN), const2d),                 # b1
                pl.BlockSpec((HIDDEN, HIDDEN), const2d),            # w2^T
                pl.BlockSpec((1, HIDDEN), const2d),                 # b2
                pl.BlockSpec((HIDDEN, ACTION_SIZE), const2d),       # w3^T
                pl.BlockSpec((1, ACTION_SIZE), const2d),            # b3
            ],
            out_specs=pl.BlockSpec((tb, ACTION_SIZE), lambda i: (i, 0)),
        ),
        compiler_params=pltpu.CompilerParams(
            dimension_semantics=("parallel",),        # megacore sharding on v7x
            vmem_limit_bytes=64 * 1024 * 1024,        # narrow windows lane-pad in VMEM
        ),
        cost_estimate=pl.CostEstimate(
            flops=flops, transcendentals=0, bytes_accessed=bytes_accessed),
    )(xk, w1t, b1r, w2t, b2r, w3t, b3r)

    return out


def init_params(key):
    """PyTorch nn.Linear-style init/convention: w (out, in), b (out,)."""
    def linear(key, fan_in, fan_out):
        kw, kb = jax.random.split(key)
        bound = 1.0 / (fan_in ** 0.5)
        w = jax.random.uniform(kw, (fan_out, fan_in), jnp.float32, -bound, bound)
        b = jax.random.uniform(kb, (fan_out,), jnp.float32, -bound, bound)
        return w, b

    k1, k2, k3 = jax.random.split(key, 3)
    w1, b1 = linear(k1, STATE_SIZE, HIDDEN)
    w2, b2 = linear(k2, HIDDEN, HIDDEN)
    w3, b3 = linear(k3, HIDDEN, ACTION_SIZE)
    return (w1, b1, w2, b2, w3, b3)


def reference_forward(x, params):
    w1, b1, w2, b2, w3, b3 = params
    h1 = jnp.maximum(x @ w1.T + b1, 0.0)
    h2 = jnp.maximum(h1 @ w2.T + b2, 0.0)
    return h2 @ w3.T + b3


if __name__ == "__main__":
    key = jax.random.PRNGKey(0)
    k_params, k_x1, k_x2, k_x3 = jax.random.split(key, 4)
    params = init_params(k_params)

    # 1) Single-state usage (mirrors the torch module's `state = torch.rand(8)`);
    #    uses the tiny-batch fast path.
    state = jax.random.uniform(k_x1, (STATE_SIZE,), jnp.float32)
    q1 = jax.block_until_ready(qnetwork_forward(state, params))
    assert q1.shape == (ACTION_SIZE,)
    assert jnp.allclose(q1, reference_forward(state[None, :], params)[0],
                        atol=1e-5, rtol=1e-5)

    # 2) Pallas path: multi-step grid with a ragged final block (no padding copy).
    x_med = jax.random.uniform(k_x2, (1000, STATE_SIZE), jnp.float32)
    q_med = jax.block_until_ready(qnetwork_forward(x_med, params, tile_batch=512))
    assert q_med.shape == (1000, ACTION_SIZE)
    assert jnp.allclose(q_med, reference_forward(x_med, params), atol=1e-5, rtol=1e-5)

    # 3) Pallas path at the default (large) tile: exercises the >=2-step split,
    #    pipelining, and the ragged tail at full tile size.
    x_big = jax.random.uniform(k_x3, (20000, STATE_SIZE), jnp.float32)
    q_big = jax.block_until_ready(qnetwork_forward(x_big, params))
    assert q_big.shape == (20000, ACTION_SIZE)
    assert jnp.allclose(q_big, reference_forward(x_big, params), atol=1e-5, rtol=1e-5)

    # 4) Optional bf16-compute path (halves the dominant HBM stream); relaxed
    #    tolerance per review.
    q_bf16 = jax.block_until_ready(
        qnetwork_forward(x_med, params, tile_batch=512, compute_dtype=jnp.bfloat16))
    assert q_bf16.shape == (1000, ACTION_SIZE)
    assert jnp.max(jnp.abs(q_bf16 - reference_forward(x_med, params))) < 1e-1

    print("KERNEL_OK")
</pallas_src>

<mosaic_0001>
module attributes {stable_mosaic.version = 11 : i64} {
  func.func @_qnetwork_kernel(%arg0: i32, %arg1: memref<512x8xf32, #tpu.memory_space<vmem>>, %arg2: memref<8x64xf32, #tpu.memory_space<vmem>>, %arg3: memref<1x64xf32, #tpu.memory_space<vmem>>, %arg4: memref<64x64xf32, #tpu.memory_space<vmem>>, %arg5: memref<1x64xf32, #tpu.memory_space<vmem>>, %arg6: memref<64x4xf32, #tpu.memory_space<vmem>>, %arg7: memref<1x4xf32, #tpu.memory_space<vmem>>, %arg8: memref<512x4xf32, #tpu.memory_space<vmem>>) attributes {dimension_semantics = [#tpu.dimension_semantics<parallel>], iteration_bounds = array<i64: 2>, scalar_prefetch = 0 : i64, scratch_operands = 0 : i64, tpu.core_type = #tpu.core_type<tc>, window_params = [{transform_indices = @transform_0, window_bounds = array<i64: 512, 8>}, {pipeline_mode = #tpu.pipeline_mode<synchronous>, transform_indices = @transform_1, window_bounds = array<i64: 8, 64>}, {pipeline_mode = #tpu.pipeline_mode<synchronous>, transform_indices = @transform_2, window_bounds = array<i64: 1, 64>}, {pipeline_mode = #tpu.pipeline_mode<synchronous>, transform_indices = @transform_3, window_bounds = array<i64: 64, 64>}, {pipeline_mode = #tpu.pipeline_mode<synchronous>, transform_indices = @transform_4, window_bounds = array<i64: 1, 64>}, {pipeline_mode = #tpu.pipeline_mode<synchronous>, transform_indices = @transform_5, window_bounds = array<i64: 64, 4>}, {pipeline_mode = #tpu.pipeline_mode<synchronous>, transform_indices = @transform_6, window_bounds = array<i64: 1, 4>}, {transform_indices = @transform_7, window_bounds = array<i64: 512, 4>}]} {
    %c0 = arith.constant 0 : index
    %c0_0 = arith.constant 0 : index
    %0 = vector.load %arg1[%c0, %c0_0] : memref<512x8xf32, #tpu.memory_space<vmem>>, vector<512x8xf32>
    %c0_1 = arith.constant 0 : index
    %c0_2 = arith.constant 0 : index
    %1 = vector.load %arg2[%c0_1, %c0_2] : memref<8x64xf32, #tpu.memory_space<vmem>>, vector<8x64xf32>
    %cst = arith.constant dense<0.000000e+00> : vector<512x64xf32>
    %2 = tpu.matmul %0, %1, %cst {dimension_numbers = #tpu.dot_dimension_numbers<[1], [0], [0], [1], [0, 0, 1, 1], [], []>} : vector<512x8xf32>, vector<8x64xf32>, vector<512x64xf32> -> vector<512x64xf32>
    %c0_3 = arith.constant 0 : index
    %c0_4 = arith.constant 0 : index
    %3 = vector.load %arg3[%c0_3, %c0_4] : memref<1x64xf32, #tpu.memory_space<vmem>>, vector<1x64xf32>
    %4 = vector.broadcast %3 : vector<1x64xf32> to vector<512x64xf32>
    %5 = arith.addf %2, %4 : vector<512x64xf32>
    %cst_5 = arith.constant 0.000000e+00 : f32
    %6 = vector.broadcast %cst_5 : f32 to vector<512x64xf32>
    %7 = arith.maximumf %5, %6 : vector<512x64xf32>
    %c0_6 = arith.constant 0 : index
    %c0_7 = arith.constant 0 : index
    %8 = vector.load %arg4[%c0_6, %c0_7] : memref<64x64xf32, #tpu.memory_space<vmem>>, vector<64x64xf32>
    %cst_8 = arith.constant dense<0.000000e+00> : vector<512x64xf32>
    %9 = tpu.matmul %7, %8, %cst_8 {dimension_numbers = #tpu.dot_dimension_numbers<[1], [0], [0], [1], [0, 0, 1, 1], [], []>} : vector<512x64xf32>, vector<64x64xf32>, vector<512x64xf32> -> vector<512x64xf32>
    %c0_9 = arith.constant 0 : index
    %c0_10 = arith.constant 0 : index
    %10 = vector.load %arg5[%c0_9, %c0_10] : memref<1x64xf32, #tpu.memory_space<vmem>>, vector<1x64xf32>
    %11 = vector.broadcast %10 : vector<1x64xf32> to vector<512x64xf32>
    %12 = arith.addf %9, %11 : vector<512x64xf32>
    %cst_11 = arith.constant 0.000000e+00 : f32
    %13 = vector.broadcast %cst_11 : f32 to vector<512x64xf32>
    %14 = arith.maximumf %12, %13 : vector<512x64xf32>
    %c0_12 = arith.constant 0 : index
    %c0_13 = arith.constant 0 : index
    %15 = vector.load %arg6[%c0_12, %c0_13] : memref<64x4xf32, #tpu.memory_space<vmem>>, vector<64x4xf32>
    %cst_14 = arith.constant dense<0.000000e+00> : vector<512x4xf32>
    %16 = tpu.matmul %14, %15, %cst_14 {dimension_numbers = #tpu.dot_dimension_numbers<[1], [0], [0], [1], [0, 0, 1, 1], [], []>} : vector<512x64xf32>, vector<64x4xf32>, vector<512x4xf32> -> vector<512x4xf32>
    %c0_15 = arith.constant 0 : index
    %c0_16 = arith.constant 0 : index
    %17 = vector.load %arg7[%c0_15, %c0_16] : memref<1x4xf32, #tpu.memory_space<vmem>>, vector<1x4xf32>
    %18 = vector.broadcast %17 : vector<1x4xf32> to vector<512x4xf32>
    %19 = arith.addf %16, %18 : vector<512x4xf32>
    %c0_17 = arith.constant 0 : index
    %c0_18 = arith.constant 0 : index
    %20 = vector.load %arg8[%c0_17, %c0_18] : memref<512x4xf32, #tpu.memory_space<vmem>>, vector<512x4xf32>
    tpu.vector_store %arg8[%c0_17, %c0_18], %19 {strides = array<i32>} : memref<512x4xf32, #tpu.memory_space<vmem>>, vector<512x4xf32>,
    return
  }
  func.func @transform_0(%arg0: i32) -> (i32, i32) {
    %c0_i32 = arith.constant 0 : i32
    %c0_i32_0 = arith.constant 0 : i32
    return %arg0, %c0_i32 : i32, i32
  }
  func.func @transform_1(%arg0: i32) -> (i32, i32) {
    %c0_i32 = arith.constant 0 : i32
    %c0_i32_0 = arith.constant 0 : i32
    %c0_i32_1 = arith.constant 0 : i32
    return %c0_i32, %c0_i32_0 : i32, i32
  }
  func.func @transform_2(%arg0: i32) -> (i32, i32) {
    %c0_i32 = arith.constant 0 : i32
    %c0_i32_0 = arith.constant 0 : i32
    %c0_i32_1 = arith.constant 0 : i32
    return %c0_i32, %c0_i32_0 : i32, i32
  }
  func.func @transform_3(%arg0: i32) -> (i32, i32) {
    %c0_i32 = arith.constant 0 : i32
    %c0_i32_0 = arith.constant 0 : i32
    %c0_i32_1 = arith.constant 0 : i32
    return %c0_i32, %c0_i32_0 : i32, i32
  }
  func.func @transform_4(%arg0: i32) -> (i32, i32) {
    %c0_i32 = arith.constant 0 : i32
    %c0_i32_0 = arith.constant 0 : i32
    %c0_i32_1 = arith.constant 0 : i32
    return %c0_i32, %c0_i32_0 : i32, i32
  }
  func.func @transform_5(%arg0: i32) -> (i32, i32) {
    %c0_i32 = arith.constant 0 : i32
    %c0_i32_0 = arith.constant 0 : i32
    %c0_i32_1 = arith.constant 0 : i32
    return %c0_i32, %c0_i32_0 : i32, i32
  }
  func.func @transform_6(%arg0: i32) -> (i32, i32) {
    %c0_i32 = arith.constant 0 : i32
    %c0_i32_0 = arith.constant 0 : i32
    %c0_i32_1 = arith.constant 0 : i32
    return %c0_i32, %c0_i32_0 : i32, i32
  }
  func.func @transform_7(%arg0: i32) -> (i32, i32) {
    %c0_i32 = arith.constant 0 : i32
    %c0_i32_0 = arith.constant 0 : i32
    return %arg0, %c0_i32 : i32, i32
  }
}

</mosaic_0001>

<llo_original>
// kernel: tpu_custom_call.1
$region0: #{tpu_custom_call.1}
  #allocation0 [shape = 'u32[]', space=smem, size = 0x4, offset = 0x4, fixed_abs, tag = 'smem constant byte address 0x4 - core index']
  #allocation1 [shape = 'u32[72,128]{1,0:T(1,128)}', space=vmem, size = 0x9000, scoped, tag = 'internal scratch']
  %s0 = inlined_call_operand.vmem [shape: f32[1000,8], index: 0, kind: input, shape index: {}]
  %s1 = inlined_call_operand.vmem [shape: f32[8,64], index: 1, kind: input, shape index: {}]
  %s2 = inlined_call_operand.vmem [shape: f32[1,64], index: 2, kind: input, shape index: {}]
  %s3 = inlined_call_operand.vmem [shape: f32[64,64], index: 3, kind: input, shape index: {}]
  %s4 = inlined_call_operand.vmem [shape: f32[1,64], index: 4, kind: input, shape index: {}]
  %s5 = inlined_call_operand.vmem [shape: f32[64,4], index: 5, kind: input, shape index: {}]
  %s6 = inlined_call_operand.vmem [shape: f32[1,4], index: 6, kind: input, shape index: {}]
  %s7 = inlined_call_operand.vmem [shape: f32[1000,4], index: 7, kind: output, shape index: {}]
  %s8 = sld [smem:[#allocation0]]
  $region109: #{tpu_custom_call.1} parent=0
    _
  %s10 = ssub.s32 1, %s8
  %s11 = scalar_select 0, %s10, %s8
  $region1: #{tpu_custom_call.1} parent=0
    #allocation2 [shape = 'u8[524288]{0}', space=vmem, size = 0x80000, scoped, tag = 'output window, operand 0']
    loop: start=0, step=1, limit=4
    $region2: #{tpu_custom_call.1} parent=1 // loop_pre_header
      _
    $region3: #{tpu_custom_call.1} parent=1 // loop_header
      %s13 = sphi 0, %s17
      %p14 = scmp.ge.s32.totalorder %s13, 4
      %s23 = sphi 0, %s25
      %s26 = sphi 0, %s23
      %s27 = sphi 0, %s26
      %s43 = sphi 0, %s27
      %s47 = sphi 0, %s47
      %s49 = sphi 0, %s47
      %s50 = sphi 0, %s49
      %s64 = sphi 0, %s50
      %s68 = sphi 0, %s68
      %s70 = sphi 0, %s68
      %s71 = sphi 0, %s70
      %s85 = sphi 0, %s71
      %s89 = sphi 0, %s89
      %s91 = sphi 0, %s89
      %s92 = sphi 0, %s91
      %s106 = sphi 0, %s92
      %s110 = sphi 0, %s110
      %s112 = sphi 0, %s110
      %s113 = sphi 0, %s112
      %s127 = sphi 0, %s113
      %s131 = sphi 0, %s131
      %s133 = sphi 0, %s131
      %s134 = sphi 0, %s133
      %s148 = sphi 0, %s134
      %s152 = sphi 0, %s152
      %s154 = sphi 0, %s152
      %s155 = sphi 0, %s154
      %s169 = sphi 0, %s155
      %s175 = sphi 0, %s177
      %s178 = sphi 0, %s175
      %s179 = sphi 0, %s178
      %s195 = sphi 0, %s179
    $region4: #{tpu_custom_call.1} parent=1 // loop_header_branch
      %16 = sbr.rel (%p14) target = $region8
    $region5: #{tpu_custom_call.1} parent=1 // loop_body
      %s18 = ssub.s32 %s13, 1
      %s19 = ssub.s32 %s13, 2
      %s20 = sadd.s32 %s13, 1
      %s21 = ssub.s32 %s13, %s20
      %p22 = scmp.eq.s32.totalorder %s21, 0
      %s24 = sadd.s32 %s23, 1
      %s25 = scalar_select %p22, %s23, %s24
      %p28 = pneg %p22
      %p29 = scmp.eq.s32.totalorder %s13, 1
      %p30 = por %p28, %p29
      %p31 = scmp.ne.s32.totalorder %s23, %s26
      %p32 = scmp.eq.s32.totalorder %s13, 0
      %p33 = por %p31, %p32
      %p34 = scmp.ne.s32.totalorder %s23, %s26
      %p35 = scmp.eq.s32.totalorder %s18, 1
      %p36 = por %p34, %p35
      %p37 = scmp.ne.s32.totalorder %s26, %s27
      %p38 = scmp.eq.s32.totalorder %s18, 0
      %p39 = por %p37, %p38
      %p40 = scmp.ne.s32.totalorder %s26, %s27
      %p41 = scmp.eq.s32.totalorder %s19, 1
      %p42 = por %p40, %p41
      %p44 = scmp.ne.s32.totalorder %s27, %s43
      %p45 = scmp.eq.s32.totalorder %s19, 0
      %p46 = por %p44, %p45
      %s48 = sadd.s32 %s47, 1
      %p51 = scmp.eq.s32.totalorder %s13, 1
      %p52 = scmp.ne.s32.totalorder %s47, %s49
      %p53 = scmp.eq.s32.totalorder %s13, 0
      %p54 = por %p52, %p53
      %p55 = scmp.ne.s32.totalorder %s47, %s49
      %p56 = scmp.eq.s32.totalorder %s18, 1
      %p57 = por %p55, %p56
      %p58 = scmp.ne.s32.totalorder %s49, %s50
      %p59 = scmp.eq.s32.totalorder %s18, 0
      %p60 = por %p58, %p59
      %p61 = scmp.ne.s32.totalorder %s49, %s50
      %p62 = scmp.eq.s32.totalorder %s19, 1
      %p63 = por %p61, %p62
      %p65 = scmp.ne.s32.totalorder %s50, %s64
      %p66 = scmp.eq.s32.totalorder %s19, 0
      %p67 = por %p65, %p66
      %s69 = sadd.s32 %s68, 1
      %p72 = scmp.eq.s32.totalorder %s13, 1
      %p73 = scmp.ne.s32.totalorder %s68, %s70
      %p74 = scmp.eq.s32.totalorder %s13, 0
      %p75 = por %p73, %p74
      %p76 = scmp.ne.s32.totalorder %s68, %s70
      %p77 = scmp.eq.s32.totalorder %s18, 1
      %p78 = por %p76, %p77
      %p79 = scmp.ne.s32.totalorder %s70, %s71
      %p80 = scmp.eq.s32.totalorder %s18, 0
      %p81 = por %p79, %p80
      %p82 = scmp.ne.s32.totalorder %s70, %s71
      %p83 = scmp.eq.s32.totalorder %s19, 1
      %p84 = por %p82, %p83
      %p86 = scmp.ne.s32.totalorder %s71, %s85
      %p87 = scmp.eq.s32.totalorder %s19, 0
      %p88 = por %p86, %p87
      %s90 = sadd.s32 %s89, 1
      %p93 = scmp.eq.s32.totalorder %s13, 1
      %p94 = scmp.ne.s32.totalorder %s89, %s91
      %p95 = scmp.eq.s32.totalorder %s13, 0
      %p96 = por %p94, %p95
      %p97 = scmp.ne.s32.totalorder %s89, %s91
      %p98 = scmp.eq.s32.totalorder %s18, 1
      %p99 = por %p97, %p98
      %p100 = scmp.ne.s32.totalorder %s91, %s92
      %p101 = scmp.eq.s32.totalorder %s18, 0
      %p102 = por %p100, %p101
      %p103 = scmp.ne.s32.totalorder %s91, %s92
      %p104 = scmp.eq.s32.totalorder %s19, 1
      %p105 = por %p103, %p104
      %p107 = scmp.ne.s32.totalorder %s92, %s106
      %p108 = scmp.eq.s32.totalorder %s19, 0
      %p109 = por %p107, %p108
      %s111 = sadd.s32 %s110, 1
      %p114 = scmp.eq.s32.totalorder %s13, 1
      %p115 = scmp.ne.s32.totalorder %s110, %s112
      %p116 = scmp.eq.s32.totalorder %s13, 0
      %p117 = por %p115, %p116
      %p118 = scmp.ne.s32.totalorder %s110, %s112
      %p119 = scmp.eq.s32.totalorder %s18, 1
      %p120 = por %p118, %p119
      %p121 = scmp.ne.s32.totalorder %s112, %s113
      %p122 = scmp.eq.s32.totalorder %s18, 0
      %p123 = por %p121, %p122
      %p124 = scmp.ne.s32.totalorder %s112, %s113
      %p125 = scmp.eq.s32.totalorder %s19, 1
      %p126 = por %p124, %p125
      %p128 = scmp.ne.s32.totalorder %s113, %s127
      %p129 = scmp.eq.s32.totalorder %s19, 0
      %p130 = por %p128, %p129
      %s132 = sadd.s32 %s131, 1
      %p135 = scmp.eq.s32.totalorder %s13, 1
      %p136 = scmp.ne.s32.totalorder %s131, %s133
      %p137 = scmp.eq.s32.totalorder %s13, 0
      %p138 = por %p136, %p137
      %p139 = scmp.ne.s32.totalorder %s131, %s133
      %p140 = scmp.eq.s32.totalorder %s18, 1
      %p141 = por %p139, %p140
      %p142 = scmp.ne.s32.totalorder %s133, %s134
      %p143 = scmp.eq.s32.totalorder %s18, 0
      %p144 = por %p142, %p143
      %p145 = scmp.ne.s32.totalorder %s133, %s134
      %p146 = scmp.eq.s32.totalorder %s19, 1
      %p147 = por %p145, %p146
      %p149 = scmp.ne.s32.totalorder %s134, %s148
      %p150 = scmp.eq.s32.totalorder %s19, 0
      %p151 = por %p149, %p150
      %s153 = sadd.s32 %s152, 1
      %p156 = scmp.eq.s32.totalorder %s13, 1
      %p157 = scmp.ne.s32.totalorder %s152, %s154
      %p158 = scmp.eq.s32.totalorder %s13, 0
      %p159 = por %p157, %p158
      %p160 = scmp.ne.s32.totalorder %s152, %s154
      %p161 = scmp.eq.s32.totalorder %s18, 1
      %p162 = por %p160, %p161
      %p163 = scmp.ne.s32.totalorder %s154, %s155
      %p164 = scmp.eq.s32.totalorder %s18, 0
      %p165 = por %p163, %p164
      %p166 = scmp.ne.s32.totalorder %s154, %s155
      %p167 = scmp.eq.s32.totalorder %s19, 1
      %p168 = por %p166, %p167
      %p170 = scmp.ne.s32.totalorder %s155, %s169
      %p171 = scmp.eq.s32.totalorder %s19, 0
      %p172 = por %p170, %p171
      %s173 = ssub.s32 %s13, %s20
      %p174 = scmp.eq.s32.totalorder %s173, 0
      %s176 = sadd.s32 %s175, 1
      %s177 = scalar_select %p174, %s175, %s176
      %p180 = pneg %p174
      %p181 = scmp.eq.s32.totalorder %s13, 1
      %p182 = por %p180, %p181
      %p183 = scmp.ne.s32.totalorder %s175, %s178
      %p184 = scmp.eq.s32.totalorder %s13, 0
      %p185 = por %p183, %p184
      %p186 = scmp.ne.s32.totalorder %s175, %s178
      %p187 = scmp.eq.s32.totalorder %s18, 1
      %p188 = por %p186, %p187
      %p189 = scmp.ne.s32.totalorder %s178, %s179
      %p190 = scmp.eq.s32.totalorder %s18, 0
      %p191 = por %p189, %p190
      %p192 = scmp.ne.s32.totalorder %s178, %s179
      %p193 = scmp.eq.s32.totalorder %s19, 1
      %p194 = por %p192, %p193
      %p196 = scmp.ne.s32.totalorder %s179, %s195
      %p197 = scmp.eq.s32.totalorder %s19, 0
      %p198 = por %p196, %p197
      %p199 = scmp.le.s32.totalorder 1, %s13
      %p200 = scmp.lt.s32.totalorder %s13, 3
      %p201 = pnand %p199, %p200
      %p202 = pneg %p201
      // Predicated region
      $region9: #{tpu_custom_call.1} parent=5 // pred_check
        _
      $region10: #{tpu_custom_call.1} parent=5 // pred_check_branch
        %204 = sbr.rel (%p201) target = $region12
      $region11: #{tpu_custom_call.1} parent=5 // pred_region
        %s205 = ssub.s32 %s13, 1
        // Predicated region
        $region13: #{tpu_custom_call.1} parent=11 // pred_check
          %p206 = pneg %p60
        $region14: #{tpu_custom_call.1} parent=11 // pred_check_branch
          %208 = sbr.rel (%p206) target = $region16
        $region15: #{tpu_custom_call.1} parent=11 // pred_region
          _
        $region16: #{tpu_custom_call.1} parent=11 // pred_fallthru
          _
        // Predicated region
        $region17: #{tpu_custom_call.1} parent=11 // pred_check
          %p209 = pneg %p81
        $region18: #{tpu_custom_call.1} parent=11 // pred_check_branch
          %211 = sbr.rel (%p209) target = $region20
        $region19: #{tpu_custom_call.1} parent=11 // pred_region
          _
        $region20: #{tpu_custom_call.1} parent=11 // pred_fallthru
          _
        // Predicated region
        $region21: #{tpu_custom_call.1} parent=11 // pred_check
          %p212 = pneg %p102
        $region22: #{tpu_custom_call.1} parent=11 // pred_check_branch
          %214 = sbr.rel (%p212) target = $region24
        $region23: #{tpu_custom_call.1} parent=11 // pred_region
          _
        $region24: #{tpu_custom_call.1} parent=11 // pred_fallthru
          _
        // Predicated region
        $region25: #{tpu_custom_call.1} parent=11 // pred_check
          %p215 = pneg %p123
        $region26: #{tpu_custom_call.1} parent=11 // pred_check_branch
          %217 = sbr.rel (%p215) target = $region28
        $region27: #{tpu_custom_call.1} parent=11 // pred_region
          _
        $region28: #{tpu_custom_call.1} parent=11 // pred_fallthru
          _
        // Predicated region
        $region29: #{tpu_custom_call.1} parent=11 // pred_check
          %p218 = pneg %p144
        $region30: #{tpu_custom_call.1} parent=11 // pred_check_branch
          %220 = sbr.rel (%p218) target = $region32
        $region31: #{tpu_custom_call.1} parent=11 // pred_region
          _
        $region32: #{tpu_custom_call.1} parent=11 // pred_fallthru
          _
        // Predicated region
        $region33: #{tpu_custom_call.1} parent=11 // pred_check
          %p221 = pneg %p165
        $region34: #{tpu_custom_call.1} parent=11 // pred_check_branch
          %223 = sbr.rel (%p221) target = $region36
        $region35: #{tpu_custom_call.1} parent=11 // pred_region
          _
        $region36: #{tpu_custom_call.1} parent=11 // pred_fallthru
          _
      $region12: #{tpu_custom_call.1} parent=5 // pred_fallthru
        _
      %p224 = scmp.lt.s32.totalorder %s13, 2
      // Predicated region
      $region37: #{tpu_custom_call.1} parent=5 // pred_check
        %p225 = pneg %p224
      $region38: #{tpu_custom_call.1} parent=5 // pred_check_branch
        %227 = sbr.rel (%p225) target = $region40
      $region39: #{tpu_custom_call.1} parent=5 // pred_region
        // Predicated region
        $region41: #{tpu_custom_call.1} parent=39 // pred_check
          %p228 = pneg %p33
        $region42: #{tpu_custom_call.1} parent=39 // pred_check_branch
          %230 = sbr.rel (%p228) target = $region44
        $region43: #{tpu_custom_call.1} parent=39 // pred_region
          %s231 = smul.u32 64, %s13
          %s232 = ssub.s32 125, %s231
          %p233 = scmp.lt.s32.totalorder %s232, 64
          %s234 = scalar_select %p233, %s232, 64
          %s235 = smul.u32 8, %s234
          %p236 = scmp.lt.s32.totalorder %s231, 124
          %s237 = scalar_select %p236, %s231, 124
          %s238 = smul.addr %s237, 8
          %s239 = scalar_lea.vmem %s0, %s238
          %s240 = smul.u32 64, %s13
          %s241 = ssub.s32 125, %s240
          %p242 = scmp.lt.s32.totalorder %s241, 64
          %s243 = scalar_select %p242, %s241, 64
          %s244 = smul.u32 8, %s243
        $region44: #{tpu_custom_call.1} parent=39 // pred_fallthru
          _
      $region40: #{tpu_custom_call.1} parent=5 // pred_fallthru
        _
      %p245 = scmp.le.s32.totalorder 1, %s13
      %p246 = scmp.lt.s32.totalorder %s13, 3
      %p247 = pnand %p245, %p246
      %p248 = pneg %p247
      // Predicated region
      $region45: #{tpu_custom_call.1} parent=5 // pred_check
        _
      $region46: #{tpu_custom_call.1} parent=5 // pred_check_branch
        %250 = sbr.rel (%p247) target = $region48
      $region47: #{tpu_custom_call.1} parent=5 // pred_region
        %s251 = ssub.s32 %s13, 1
        %s252 = smul.u32 64, %s18
        %s253 = ssub.s32 125, %s252
        %p254 = scmp.lt.s32.totalorder %s253, 64
        %s255 = scalar_select %p254, %s253, 64
        %s256 = smul.u32 8, %s255
        %p257 = scmp.lt.s32.totalorder %s252, 124
        %s258 = scalar_select %p257, %s252, 124
        %s259 = smul.addr %s258, 8
        %s260 = scalar_lea.vmem %s0, %s259
        %p261 = pneg %p39
        %p262 = pneg %p36
        %p263 = pneg %p60
        %p264 = pneg %p57
        %p265 = pneg %p81
        %p266 = pneg %p78
        %p267 = pneg %p102
        %p268 = pneg %p99
        %p269 = pneg %p123
        %p270 = pneg %p120
        %p271 = pneg %p144
        %p272 = pneg %p141
        %p273 = pneg %p165
        %p274 = pneg %p162
        %p275 = pneg %p191
        %p276 = pneg %p188
        %s277 = sand.u32 %s178, 1
        %s278 = sand.u32 %s178, 1
        %s279 = smul.addr %s278, 512
        %s280 = scalar_lea.vmem [#allocation2], %s279
        %s281 = smul.u32 64, %s18
        %s282 = ssub.s32 125, %s281
        %p283 = scmp.lt.s32.totalorder %s282, 64
        %s284 = scalar_select %p283, %s282, 64
        %s285 = smul.u32 8, %s284
        %p286 = scmp.lt.s32.totalorder %s281, 124
        %s287 = scalar_select %p286, %s281, 124
        %s288 = smul.addr %s287, 8
        %s289 = scalar_lea.vmem %s0, %s288
        %s290 = smul.u32 64, %s18
        %s291 = ssub.s32 125, %s290
        %p292 = scmp.lt.s32.totalorder %s291, 64
        %s293 = scalar_select %p292, %s291, 64
        %s294 = smul.u32 8, %s293
        %s295 = smul.u32 64, %s18
        %s296 = ssub.s32 125, %s295
        %p297 = scmp.lt.s32.totalorder %s296, 64
        %s298 = scalar_select %p297, %s296, 64
        %s299 = smul.u32 8, %s298
        %v300 = vld [vmem:[%s289] sm:$0xff]
        %v301 = vld [vmem:[%s289 + $0x8] sm:$0xff]
        %v302 = vld [vmem:[%s289 + $0x10] sm:$0xff]
        %v303 = vld [vmem:[%s289 + $0x18] sm:$0xff]
        %v304 = vld [vmem:[%s289 + $0x20] sm:$0xff]
        %v305 = vld [vmem:[%s289 + $0x28] sm:$0xff]
        %v306 = vld [vmem:[%s289 + $0x30] sm:$0xff]
        %v307 = vld [vmem:[%s289 + $0x38] sm:$0xff]
        %v308 = vld [vmem:[%s289 + $0x40] sm:$0xff]
        %v309 = vld [vmem:[%s289 + $0x48] sm:$0xff]
        %v310 = vld [vmem:[%s289 + $0x50] sm:$0xff]
        %v311 = vld [vmem:[%s289 + $0x58] sm:$0xff]
        %v312 = vld [vmem:[%s289 + $0x60] sm:$0xff]
        %v313 = vld [vmem:[%s289 + $0x68] sm:$0xff]
        %v314 = vld [vmem:[%s289 + $0x70] sm:$0xff]
        %v315 = vld [vmem:[%s289 + $0x78] sm:$0xff]
        %v316 = vld [vmem:[%s289 + $0x80] sm:$0xff]
        %v317 = vld [vmem:[%s289 + $0x88] sm:$0xff]
        %v318 = vld [vmem:[%s289 + $0x90] sm:$0xff]
        %v319 = vld [vmem:[%s289 + $0x98] sm:$0xff]
        %v320 = vld [vmem:[%s289 + $0xa0] sm:$0xff]
        %v321 = vld [vmem:[%s289 + $0xa8] sm:$0xff]
        %v322 = vld [vmem:[%s289 + $0xb0] sm:$0xff]
        %v323 = vld [vmem:[%s289 + $0xb8] sm:$0xff]
        %v324 = vld [vmem:[%s289 + $0xc0] sm:$0xff]
        %v325 = vld [vmem:[%s289 + $0xc8] sm:$0xff]
        %v326 = vld [vmem:[%s289 + $0xd0] sm:$0xff]
        %v327 = vld [vmem:[%s289 + $0xd8] sm:$0xff]
        %v328 = vld [vmem:[%s289 + $0xe0] sm:$0xff]
        %v329 = vld [vmem:[%s289 + $0xe8] sm:$0xff]
        %v330 = vld [vmem:[%s289 + $0xf0] sm:$0xff]
        %v331 = vld [vmem:[%s289 + $0xf8] sm:$0xff]
        %v332 = vld [vmem:[%s289 + $0x100] sm:$0xff]
        %v333 = vld [vmem:[%s289 + $0x108] sm:$0xff]
        %v334 = vld [vmem:[%s289 + $0x110] sm:$0xff]
        %v335 = vld [vmem:[%s289 + $0x118] sm:$0xff]
        %v336 = vld [vmem:[%s289 + $0x120] sm:$0xff]
        %v337 = vld [vmem:[%s289 + $0x128] sm:$0xff]
        %v338 = vld [vmem:[%s289 + $0x130] sm:$0xff]
        %v339 = vld [vmem:[%s289 + $0x138] sm:$0xff]
        %v340 = vld [vmem:[%s289 + $0x140] sm:$0xff]
        %v341 = vld [vmem:[%s289 + $0x148] sm:$0xff]
        %v342 = vld [vmem:[%s289 + $0x150] sm:$0xff]
        %v343 = vld [vmem:[%s289 + $0x158] sm:$0xff]
        %v344 = vld [vmem:[%s289 + $0x160] sm:$0xff]
        %v345 = vld [vmem:[%s289 + $0x168] sm:$0xff]
        %v346 = vld [vmem:[%s289 + $0x170] sm:$0xff]
        %v347 = vld [vmem:[%s289 + $0x178] sm:$0xff]
        %v348 = vld [vmem:[%s289 + $0x180] sm:$0xff]
        %v349 = vld [vmem:[%s289 + $0x188] sm:$0xff]
        %v350 = vld [vmem:[%s289 + $0x190] sm:$0xff]
        %v351 = vld [vmem:[%s289 + $0x198] sm:$0xff]
        %v352 = vld [vmem:[%s289 + $0x1a0] sm:$0xff]
        %v353 = vld [vmem:[%s289 + $0x1a8] sm:$0xff]
        %v354 = vld [vmem:[%s289 + $0x1b0] sm:$0xff]
        %v355 = vld [vmem:[%s289 + $0x1b8] sm:$0xff]
        %v356 = vld [vmem:[%s289 + $0x1c0] sm:$0xff]
        %v357 = vld [vmem:[%s289 + $0x1c8] sm:$0xff]
        %v358 = vld [vmem:[%s289 + $0x1d0] sm:$0xff]
        %v359 = vld [vmem:[%s289 + $0x1d8] sm:$0xff]
        %v360 = vld [vmem:[%s289 + $0x1e0] sm:$0xff]
        %v361 = vld [vmem:[%s289 + $0x1e8] sm:$0xff]
        %v362 = vld [vmem:[%s289 + $0x1f0] sm:$0xff]
        %v363 = vld [vmem:[%s289 + $0x1f8] sm:$0xff]
        %v364 = vld [vmem:[%s1] sm:$0xff]
        %v365 = vld [vmem:[%s2] sm:$0x1]
        %v367 = vperm.slane %v365, 0
        %vm369 = vcmask 64512
        %v371 = vsel %vm369, %v300, 0
        %v374 = vsel %vm369, %v301, 0
        %v377 = vsel %vm369, %v302, 0
        %v380 = vsel %vm369, %v303, 0
        %v383 = vsel %vm369, %v304, 0
        %v386 = vsel %vm369, %v305, 0
        %v389 = vsel %vm369, %v306, 0
        %v392 = vsel %vm369, %v307, 0
        %v395 = vsel %vm369, %v308, 0
        %v398 = vsel %vm369, %v309, 0
        %v401 = vsel %vm369, %v310, 0
        %v404 = vsel %vm369, %v311, 0
        %v407 = vsel %vm369, %v312, 0
        %v410 = vsel %vm369, %v313, 0
        %v413 = vsel %vm369, %v314, 0
        %v416 = vsel %vm369, %v315, 0
        %v419 = vsel %vm369, %v316, 0
        %v422 = vsel %vm369, %v317, 0
        %v425 = vsel %vm369, %v318, 0
        %v428 = vsel %vm369, %v319, 0
        %v431 = vsel %vm369, %v320, 0
        %v434 = vsel %vm369, %v321, 0
        %v437 = vsel %vm369, %v322, 0
        %v440 = vsel %vm369, %v323, 0
        %v443 = vsel %vm369, %v324, 0
        %v446 = vsel %vm369, %v325, 0
        %v449 = vsel %vm369, %v326, 0
        %v452 = vsel %vm369, %v327, 0
        %v455 = vsel %vm369, %v328, 0
        %v458 = vsel %vm369, %v329, 0
        %v461 = vsel %vm369, %v330, 0
        %v464 = vsel %vm369, %v331, 0
        %v467 = vsel %vm369, %v332, 0
        %v470 = vsel %vm369, %v333, 0
        %v473 = vsel %vm369, %v334, 0
        %v476 = vsel %vm369, %v335, 0
        %v479 = vsel %vm369, %v336, 0
        %v482 = vsel %vm369, %v337, 0
        %v485 = vsel %vm369, %v338, 0
        %v488 = vsel %vm369, %v339, 0
        %v491 = vsel %vm369, %v340, 0
        %v494 = vsel %vm369, %v341, 0
        %v497 = vsel %vm369, %v342, 0
        %v500 = vsel %vm369, %v343, 0
        %v503 = vsel %vm369, %v344, 0
        %v506 = vsel %vm369, %v345, 0
        %v509 = vsel %vm369, %v346, 0
        %v512 = vsel %vm369, %v347, 0
        %v515 = vsel %vm369, %v348, 0
        %v518 = vsel %vm369, %v349, 0
        %v521 = vsel %vm369, %v350, 0
        %v524 = vsel %vm369, %v351, 0
        %v527 = vsel %vm369, %v352, 0
        %v530 = vsel %vm369, %v353, 0
        %v533 = vsel %vm369, %v354, 0
        %v536 = vsel %vm369, %v355, 0
        %v539 = vsel %vm369, %v356, 0
        %v542 = vsel %vm369, %v357, 0
        %v545 = vsel %vm369, %v358, 0
        %v548 = vsel %vm369, %v359, 0
        %v551 = vsel %vm369, %v360, 0
        %v554 = vsel %vm369, %v361, 0
        %v557 = vsel %vm369, %v362, 0
        %v560 = vsel %vm369, %v363, 0
        %562 = vmatpush.msra.mxu0 0.0
        %563 = vmatpush.msra.mxu0 0.0
        %564 = vmatpush.msra.mxu0 0.0
        %565 = vmatpush.msra.mxu0 0.0
        %566 = vmatpush.msra.mxu0 0.0
        %567 = vmatpush.msra.mxu0 0.0
        %568 = vmatpush.msra.mxu0 0.0
        %569 = vmatpush.msra.mxu0 0.0
        %570 = vmatpush.msra.mxu0 0.0
        %571 = vmatpush.msra.mxu0 0.0
        %572 = vmatpush.msra.mxu0 0.0
        %573 = vmatpush.msra.mxu0 0.0
        %574 = vmatpush.msra.mxu0 0.0
        %575 = vmatpush.msra.mxu0 0.0
        %576 = vmatpush.msra.mxu0 0.0
        %577 = vmatpush.msra.mxu0 %v364
        %578 = vmatmul.f32.gmra.mxu0 %v371
        %v579 = vpop.f32.mrf.mxu0
        %v580 = vadd.f32 %v367, %v579
        %581 = vmatmul.f32.gmra.mxu0 %v374
        %v582 = vpop.f32.mrf.mxu0
        %v583 = vadd.f32 %v367, %v582
        %584 = vmatmul.f32.gmra.mxu0 %v377
        %v585 = vpop.f32.mrf.mxu0
        %v586 = vadd.f32 %v367, %v585
        %587 = vmatmul.f32.gmra.mxu0 %v380
        %v588 = vpop.f32.mrf.mxu0
        %v589 = vadd.f32 %v367, %v588
        %590 = vmatmul.f32.gmra.mxu0 %v383
        %v591 = vpop.f32.mrf.mxu0
        %v592 = vadd.f32 %v367, %v591
        %593 = vmatmul.f32.gmra.mxu0 %v386
        %v594 = vpop.f32.mrf.mxu0
        %v595 = vadd.f32 %v367, %v594
        %596 = vmatmul.f32.gmra.mxu0 %v389
        %v597 = vpop.f32.mrf.mxu0
        %v598 = vadd.f32 %v367, %v597
        %599 = vmatmul.f32.gmra.mxu0 %v392
        %v600 = vpop.f32.mrf.mxu0
        %v601 = vadd.f32 %v367, %v600
        %602 = vmatmul.f32.gmra.mxu0 %v395
        %v603 = vpop.f32.mrf.mxu0
        %v604 = vadd.f32 %v367, %v603
        %605 = vmatmul.f32.gmra.mxu0 %v398
        %v606 = vpop.f32.mrf.mxu0
        %v607 = vadd.f32 %v367, %v606
        %608 = vmatmul.f32.gmra.mxu0 %v401
        %v609 = vpop.f32.mrf.mxu0
        %v610 = vadd.f32 %v367, %v609
        %611 = vmatmul.f32.gmra.mxu0 %v404
        %v612 = vpop.f32.mrf.mxu0
        %v613 = vadd.f32 %v367, %v612
        %614 = vmatmul.f32.gmra.mxu0 %v407
        %v615 = vpop.f32.mrf.mxu0
        %v616 = vadd.f32 %v367, %v615
        %617 = vmatmul.f32.gmra.mxu0 %v410
        %v618 = vpop.f32.mrf.mxu0
        %v619 = vadd.f32 %v367, %v618
        %620 = vmatmul.f32.gmra.mxu0 %v413
        %v621 = vpop.f32.mrf.mxu0
        %v622 = vadd.f32 %v367, %v621
        %623 = vmatmul.f32.gmra.mxu0 %v416
        %v624 = vpop.f32.mrf.mxu0
        %v625 = vadd.f32 %v367, %v624
        %626 = vmatmul.f32.gmra.mxu0 %v419
        %v627 = vpop.f32.mrf.mxu0
        %v628 = vadd.f32 %v367, %v627
        %629 = vmatmul.f32.gmra.mxu0 %v422
        %v630 = vpop.f32.mrf.mxu0
        %v631 = vadd.f32 %v367, %v630
        %632 = vmatmul.f32.gmra.mxu0 %v425
        %v633 = vpop.f32.mrf.mxu0
        %v634 = vadd.f32 %v367, %v633
        %635 = vmatmul.f32.gmra.mxu0 %v428
        %v636 = vpop.f32.mrf.mxu0
        %v637 = vadd.f32 %v367, %v636
        %638 = vmatmul.f32.gmra.mxu0 %v431
        %v639 = vpop.f32.mrf.mxu0
        %v640 = vadd.f32 %v367, %v639
        %641 = vmatmul.f32.gmra.mxu0 %v434
        %v642 = vpop.f32.mrf.mxu0
        %v643 = vadd.f32 %v367, %v642
        %644 = vmatmul.f32.gmra.mxu0 %v437
        %v645 = vpop.f32.mrf.mxu0
        %v646 = vadd.f32 %v367, %v645
        %647 = vmatmul.f32.gmra.mxu0 %v440
        %v648 = vpop.f32.mrf.mxu0
        %v649 = vadd.f32 %v367, %v648
        %650 = vmatmul.f32.gmra.mxu0 %v443
        %v651 = vpop.f32.mrf.mxu0
        %v652 = vadd.f32 %v367, %v651
        %653 = vmatmul.f32.gmra.mxu0 %v446
        %v654 = vpop.f32.mrf.mxu0
        %v655 = vadd.f32 %v367, %v654
        %656 = vmatmul.f32.gmra.mxu0 %v449
        %v657 = vpop.f32.mrf.mxu0
        %v658 = vadd.f32 %v367, %v657
        %659 = vmatmul.f32.gmra.mxu0 %v452
        %v660 = vpop.f32.mrf.mxu0
        %v661 = vadd.f32 %v367, %v660
        %662 = vmatmul.f32.gmra.mxu0 %v455
        %v663 = vpop.f32.mrf.mxu0
        %v664 = vadd.f32 %v367, %v663
        %665 = vmatmul.f32.gmra.mxu0 %v458
        %v666 = vpop.f32.mrf.mxu0
        %v667 = vadd.f32 %v367, %v666
        %668 = vmatmul.f32.gmra.mxu0 %v461
        %v669 = vpop.f32.mrf.mxu0
        %v670 = vadd.f32 %v367, %v669
        %671 = vmatmul.f32.gmra.mxu0 %v464
        %v672 = vpop.f32.mrf.mxu0
        %v673 = vadd.f32 %v367, %v672
        %674 = vmatmul.f32.gmra.mxu0 %v467
        %v675 = vpop.f32.mrf.mxu0
        %v676 = vadd.f32 %v367, %v675
        %677 = vmatmul.f32.gmra.mxu0 %v470
        %v678 = vpop.f32.mrf.mxu0
        %v679 = vadd.f32 %v367, %v678
        %680 = vmatmul.f32.gmra.mxu0 %v473
        %v681 = vpop.f32.mrf.mxu0
        %v682 = vadd.f32 %v367, %v681
        %683 = vmatmul.f32.gmra.mxu0 %v476
        %v684 = vpop.f32.mrf.mxu0
        %v685 = vadd.f32 %v367, %v684
        %686 = vmatmul.f32.gmra.mxu0 %v479
        %v687 = vpop.f32.mrf.mxu0
        %v688 = vadd.f32 %v367, %v687
        %689 = vmatmul.f32.gmra.mxu0 %v482
        %v690 = vpop.f32.mrf.mxu0
        %v691 = vadd.f32 %v367, %v690
        %692 = vmatmul.f32.gmra.mxu0 %v485
        %v693 = vpop.f32.mrf.mxu0
        %v694 = vadd.f32 %v367, %v693
        %695 = vmatmul.f32.gmra.mxu0 %v488
        %v696 = vpop.f32.mrf.mxu0
        %v697 = vadd.f32 %v367, %v696
        %698 = vmatmul.f32.gmra.mxu0 %v491
        %v699 = vpop.f32.mrf.mxu0
        %v700 = vadd.f32 %v367, %v699
        %701 = vmatmul.f32.gmra.mxu0 %v494
        %v702 = vpop.f32.mrf.mxu0
        %v703 = vadd.f32 %v367, %v702
        %704 = vmatmul.f32.gmra.mxu0 %v497
        %v705 = vpop.f32.mrf.mxu0
        %v706 = vadd.f32 %v367, %v705
        %707 = vmatmul.f32.gmra.mxu0 %v500
        %v708 = vpop.f32.mrf.mxu0
        %v709 = vadd.f32 %v367, %v708
        %710 = vmatmul.f32.gmra.mxu0 %v503
        %v711 = vpop.f32.mrf.mxu0
        %v712 = vadd.f32 %v367, %v711
        %713 = vmatmul.f32.gmra.mxu0 %v506
        %v714 = vpop.f32.mrf.mxu0
        %v715 = vadd.f32 %v367, %v714
        %716 = vmatmul.f32.gmra.mxu0 %v509
        %v717 = vpop.f32.mrf.mxu0
        %v718 = vadd.f32 %v367, %v717
        %719 = vmatmul.f32.gmra.mxu0 %v512
        %v720 = vpop.f32.mrf.mxu0
        %v721 = vadd.f32 %v367, %v720
        %722 = vmatmul.f32.gmra.mxu0 %v515
        %v723 = vpop.f32.mrf.mxu0
        %v724 = vadd.f32 %v367, %v723
        %725 = vmatmul.f32.gmra.mxu0 %v518
        %v726 = vpop.f32.mrf.mxu0
        %v727 = vadd.f32 %v367, %v726
        %728 = vmatmul.f32.gmra.mxu0 %v521
        %v729 = vpop.f32.mrf.mxu0
        %v730 = vadd.f32 %v367, %v729
        %731 = vmatmul.f32.gmra.mxu0 %v524
        %v732 = vpop.f32.mrf.mxu0
        %v733 = vadd.f32 %v367, %v732
        %734 = vmatmul.f32.gmra.mxu0 %v527
        %v735 = vpop.f32.mrf.mxu0
        %v736 = vadd.f32 %v367, %v735
        %737 = vmatmul.f32.gmra.mxu0 %v530
        %v738 = vpop.f32.mrf.mxu0
        %v739 = vadd.f32 %v367, %v738
        %740 = vmatmul.f32.gmra.mxu0 %v533
        %v741 = vpop.f32.mrf.mxu0
        %v742 = vadd.f32 %v367, %v741
        %743 = vmatmul.f32.gmra.mxu0 %v536
        %v744 = vpop.f32.mrf.mxu0
        %v745 = vadd.f32 %v367, %v744
        %746 = vmatmul.f32.gmra.mxu0 %v539
        %v747 = vpop.f32.mrf.mxu0
        %v748 = vadd.f32 %v367, %v747
        %749 = vmatmul.f32.gmra.mxu0 %v542
        %v750 = vpop.f32.mrf.mxu0
        %v751 = vadd.f32 %v367, %v750
        %752 = vmatmul.f32.gmra.mxu0 %v545
        %v753 = vpop.f32.mrf.mxu0
        %v754 = vadd.f32 %v367, %v753
        %755 = vmatmul.f32.gmra.mxu0 %v548
        %v756 = vpop.f32.mrf.mxu0
        %v757 = vadd.f32 %v367, %v756
        %758 = vmatmul.f32.gmra.mxu0 %v551
        %v759 = vpop.f32.mrf.mxu0
        %v760 = vadd.f32 %v367, %v759
        %761 = vmatmul.f32.gmra.mxu0 %v554
        %v762 = vpop.f32.mrf.mxu0
        %v763 = vadd.f32 %v367, %v762
        %764 = vmatmul.f32.gmra.mxu0 %v557
        %v765 = vpop.f32.mrf.mxu0
        %v766 = vadd.f32 %v367, %v765
        %767 = vmatmul.f32.gmra.mxu0 %v560
        %v768 = vpop.f32.mrf.mxu0
        %v769 = vadd.f32 %v367, %v768
        %770 = vdwg.mxu0
        %v771 = vmax.f32 %v580, 0.0
        %v772 = vmax.f32 %v583, 0.0
        %v773 = vmax.f32 %v586, 0.0
        %v774 = vmax.f32 %v589, 0.0
        %v775 = vmax.f32 %v592, 0.0
        %v776 = vmax.f32 %v595, 0.0
        %v777 = vmax.f32 %v598, 0.0
        %v778 = vmax.f32 %v601, 0.0
        %v779 = vmax.f32 %v604, 0.0
        %v780 = vmax.f32 %v607, 0.0
        %v781 = vmax.f32 %v610, 0.0
        %v782 = vmax.f32 %v613, 0.0
        %v783 = vmax.f32 %v616, 0.0
        %v784 = vmax.f32 %v619, 0.0
        %v785 = vmax.f32 %v622, 0.0
        %v786 = vmax.f32 %v625, 0.0
        %v787 = vmax.f32 %v628, 0.0
        %v788 = vmax.f32 %v631, 0.0
        %v789 = vmax.f32 %v634, 0.0
        %v790 = vmax.f32 %v637, 0.0
        %v791 = vmax.f32 %v640, 0.0
        %v792 = vmax.f32 %v643, 0.0
        %v793 = vmax.f32 %v646, 0.0
        %v794 = vmax.f32 %v649, 0.0
        %v795 = vmax.f32 %v652, 0.0
        %v796 = vmax.f32 %v655, 0.0
        %v797 = vmax.f32 %v658, 0.0
        %v798 = vmax.f32 %v661, 0.0
        %v799 = vmax.f32 %v664, 0.0
        %v800 = vmax.f32 %v667, 0.0
        %v801 = vmax.f32 %v670, 0.0
        %v802 = vmax.f32 %v673, 0.0
        %v803 = vmax.f32 %v676, 0.0
        %v804 = vmax.f32 %v679, 0.0
        %v805 = vmax.f32 %v682, 0.0
        %v806 = vmax.f32 %v685, 0.0
        %v807 = vmax.f32 %v688, 0.0
        %v808 = vmax.f32 %v691, 0.0
        %v809 = vmax.f32 %v694, 0.0
        %v810 = vmax.f32 %v697, 0.0
        %v811 = vmax.f32 %v700, 0.0
        %v812 = vmax.f32 %v703, 0.0
        %v813 = vmax.f32 %v706, 0.0
        %v814 = vmax.f32 %v709, 0.0
        %v815 = vmax.f32 %v712, 0.0
        %v816 = vmax.f32 %v715, 0.0
        %v817 = vmax.f32 %v718, 0.0
        %v818 = vmax.f32 %v721, 0.0
        %v819 = vmax.f32 %v724, 0.0
        %v820 = vmax.f32 %v727, 0.0
        %v821 = vmax.f32 %v730, 0.0
        %v822 = vmax.f32 %v733, 0.0
        %v823 = vmax.f32 %v736, 0.0
        %v824 = vmax.f32 %v739, 0.0
        %v825 = vmax.f32 %v742, 0.0
        %v826 = vmax.f32 %v745, 0.0
        %v827 = vmax.f32 %v748, 0.0
        %v828 = vmax.f32 %v751, 0.0
        %v829 = vmax.f32 %v754, 0.0
        %v830 = vmax.f32 %v757, 0.0
        %v831 = vmax.f32 %v760, 0.0
        %v832 = vmax.f32 %v763, 0.0
        %v833 = vmax.f32 %v766, 0.0
        %v834 = vmax.f32 %v769, 0.0
        %v835 = vld [vmem:[%s3] sm:$0xff]
        %v836 = vld [vmem:[%s3 + $0x8] sm:$0xff]
        %v837 = vld [vmem:[%s3 + $0x10] sm:$0xff]
        %v838 = vld [vmem:[%s3 + $0x18] sm:$0xff]
        %v839 = vld [vmem:[%s3 + $0x20] sm:$0xff]
        %v840 = vld [vmem:[%s3 + $0x28] sm:$0xff]
        %v841 = vld [vmem:[%s3 + $0x30] sm:$0xff]
        %v842 = vld [vmem:[%s3 + $0x38] sm:$0xff]
        %v843 = vld [vmem:[%s4] sm:$0x1]
        %v845 = vperm.slane %v843, 0
        %vm847 = vcmask 523264
        %v849 = vsel %vm847, %v771, 0
        %v852 = vsel %vm847, %v772, 0
        %v855 = vsel %vm847, %v773, 0
        %v858 = vsel %vm847, %v774, 0
        %v861 = vsel %vm847, %v775, 0
        %v864 = vsel %vm847, %v776, 0
        %v867 = vsel %vm847, %v777, 0
        %v870 = vsel %vm847, %v778, 0
        %v873 = vsel %vm847, %v779, 0
        %v876 = vsel %vm847, %v780, 0
        %v879 = vsel %vm847, %v781, 0
        %v882 = vsel %vm847, %v782, 0
        %v885 = vsel %vm847, %v783, 0
        %v888 = vsel %vm847, %v784, 0
        %v891 = vsel %vm847, %v785, 0
        %v894 = vsel %vm847, %v786, 0
        %v897 = vsel %vm847, %v787, 0
        %v900 = vsel %vm847, %v788, 0
        %v903 = vsel %vm847, %v789, 0
        %v906 = vsel %vm847, %v790, 0
        %v909 = vsel %vm847, %v791, 0
        %v912 = vsel %vm847, %v792, 0
        %v915 = vsel %vm847, %v793, 0
        %v918 = vsel %vm847, %v794, 0
        %v921 = vsel %vm847, %v795, 0
        %v924 = vsel %vm847, %v796, 0
        %v927 = vsel %vm847, %v797, 0
        %v930 = vsel %vm847, %v798, 0
        %v933 = vsel %vm847, %v799, 0
        %v936 = vsel %vm847, %v800, 0
        %v939 = vsel %vm847, %v801, 0
        %v942 = vsel %vm847, %v802, 0
        %v945 = vsel %vm847, %v803, 0
        %v948 = vsel %vm847, %v804, 0
        %v951 = vsel %vm847, %v805, 0
        %v954 = vsel %vm847, %v806, 0
        %v957 = vsel %vm847, %v807, 0
        %v960 = vsel %vm847, %v808, 0
        %v963 = vsel %vm847, %v809, 0
        %v966 = vsel %vm847, %v810, 0
        %v969 = vsel %vm847, %v811, 0
        %v972 = vsel %vm847, %v812, 0
        %v975 = vsel %vm847, %v813, 0
        %v978 = vsel %vm847, %v814, 0
        %v981 = vsel %vm847, %v815, 0
        %v984 = vsel %vm847, %v816, 0
        %v987 = vsel %vm847, %v817, 0
        %v990 = vsel %vm847, %v818, 0
        %v993 = vsel %vm847, %v819, 0
        %v996 = vsel %vm847, %v820, 0
        %v999 = vsel %vm847, %v821, 0
        %v1002 = vsel %vm847, %v822, 0
        %v1005 = vsel %vm847, %v823, 0
        %v1008 = vsel %vm847, %v824, 0
        %v1011 = vsel %vm847, %v825, 0
        %v1014 = vsel %vm847, %v826, 0
        %v1017 = vsel %vm847, %v827, 0
        %v1020 = vsel %vm847, %v828, 0
        %v1023 = vsel %vm847, %v829, 0
        %v1026 = vsel %vm847, %v830, 0
        %v1029 = vsel %vm847, %v831, 0
        %v1032 = vsel %vm847, %v832, 0
        %v1035 = vsel %vm847, %v833, 0
        %v1038 = vsel %vm847, %v834, 0
        %1040 = vmatpush.msra.mxu0 0.0
        %1041 = vmatpush.msra.mxu0 0.0
        %1042 = vmatpush.msra.mxu0 0.0
        %1043 = vmatpush.msra.mxu0 0.0
        %1044 = vmatpush.msra.mxu0 0.0
        %1045 = vmatpush.msra.mxu0 0.0
        %1046 = vmatpush.msra.mxu0 0.0
        %1047 = vmatpush.msra.mxu0 0.0
        %1048 = vmatpush.msra.mxu0 %v842
        %1049 = vmatpush.msra.mxu0 %v841
        %1050 = vmatpush.msra.mxu0 %v840
        %1051 = vmatpush.msra.mxu0 %v839
        %1052 = vmatpush.msra.mxu0 %v838
        %1053 = vmatpush.msra.mxu0 %v837
        %1054 = vmatpush.msra.mxu0 %v836
        %1055 = vmatpush.msra.mxu0 %v835
        %1056 = vmatmul.f32.gmra.mxu0 %v849
        %v1057 = vpop.f32.mrf.mxu0
        %v1058 = vadd.f32 %v845, %v1057
        %1059 = vmatmul.f32.gmra.mxu0 %v852
        %v1060 = vpop.f32.mrf.mxu0
        %v1061 = vadd.f32 %v845, %v1060
        %1062 = vmatmul.f32.gmra.mxu0 %v855
        %v1063 = vpop.f32.mrf.mxu0
        %v1064 = vadd.f32 %v845, %v1063
        %1065 = vmatmul.f32.gmra.mxu0 %v858
        %v1066 = vpop.f32.mrf.mxu0
        %v1067 = vadd.f32 %v845, %v1066
        %1068 = vmatmul.f32.gmra.mxu0 %v861
        %v1069 = vpop.f32.mrf.mxu0
        %v1070 = vadd.f32 %v845, %v1069
        %1071 = vmatmul.f32.gmra.mxu0 %v864
        %v1072 = vpop.f32.mrf.mxu0
        %v1073 = vadd.f32 %v845, %v1072
        %1074 = vmatmul.f32.gmra.mxu0 %v867
        %v1075 = vpop.f32.mrf.mxu0
        %v1076 = vadd.f32 %v845, %v1075
        %1077 = vmatmul.f32.gmra.mxu0 %v870
        %v1078 = vpop.f32.mrf.mxu0
        %v1079 = vadd.f32 %v845, %v1078
        %1080 = vmatmul.f32.gmra.mxu0 %v873
        %v1081 = vpop.f32.mrf.mxu0
        %v1082 = vadd.f32 %v845, %v1081
        %1083 = vmatmul.f32.gmra.mxu0 %v876
        %v1084 = vpop.f32.mrf.mxu0
        %v1085 = vadd.f32 %v845, %v1084
        %1086 = vmatmul.f32.gmra.mxu0 %v879
        %v1087 = vpop.f32.mrf.mxu0
        %v1088 = vadd.f32 %v845, %v1087
        %1089 = vmatmul.f32.gmra.mxu0 %v882
        %v1090 = vpop.f32.mrf.mxu0
        %v1091 = vadd.f32 %v845, %v1090
        %1092 = vmatmul.f32.gmra.mxu0 %v885
        %v1093 = vpop.f32.mrf.mxu0
        %v1094 = vadd.f32 %v845, %v1093
        %1095 = vmatmul.f32.gmra.mxu0 %v888
        %v1096 = vpop.f32.mrf.mxu0
        %v1097 = vadd.f32 %v845, %v1096
        %1098 = vmatmul.f32.gmra.mxu0 %v891
        %v1099 = vpop.f32.mrf.mxu0
        %v1100 = vadd.f32 %v845, %v1099
        %1101 = vmatmul.f32.gmra.mxu0 %v894
        %v1102 = vpop.f32.mrf.mxu0
        %v1103 = vadd.f32 %v845, %v1102
        %1104 = vmatmul.f32.gmra.mxu0 %v897
        %v1105 = vpop.f32.mrf.mxu0
        %v1106 = vadd.f32 %v845, %v1105
        %1107 = vmatmul.f32.gmra.mxu0 %v900
        %v1108 = vpop.f32.mrf.mxu0
        %v1109 = vadd.f32 %v845, %v1108
        %1110 = vmatmul.f32.gmra.mxu0 %v903
        %v1111 = vpop.f32.mrf.mxu0
        %v1112 = vadd.f32 %v845, %v1111
        %1113 = vmatmul.f32.gmra.mxu0 %v906
        %v1114 = vpop.f32.mrf.mxu0
        %v1115 = vadd.f32 %v845, %v1114
        %1116 = vmatmul.f32.gmra.mxu0 %v909
        %v1117 = vpop.f32.mrf.mxu0
        %v1118 = vadd.f32 %v845, %v1117
        %1119 = vmatmul.f32.gmra.mxu0 %v912
        %v1120 = vpop.f32.mrf.mxu0
        %v1121 = vadd.f32 %v845, %v1120
        %1122 = vmatmul.f32.gmra.mxu0 %v915
        %v1123 = vpop.f32.mrf.mxu0
        %v1124 = vadd.f32 %v845, %v1123
        %1125 = vmatmul.f32.gmra.mxu0 %v918
        %v1126 = vpop.f32.mrf.mxu0
        %v1127 = vadd.f32 %v845, %v1126
        %1128 = vmatmul.f32.gmra.mxu0 %v921
        %v1129 = vpop.f32.mrf.mxu0
        %v1130 = vadd.f32 %v845, %v1129
        %1131 = vmatmul.f32.gmra.mxu0 %v924
        %v1132 = vpop.f32.mrf.mxu0
        %v1133 = vadd.f32 %v845, %v1132
        %1134 = vmatmul.f32.gmra.mxu0 %v927
        %v1135 = vpop.f32.mrf.mxu0
        %v1136 = vadd.f32 %v845, %v1135
        %1137 = vmatmul.f32.gmra.mxu0 %v930
        %v1138 = vpop.f32.mrf.mxu0
        %v1139 = vadd.f32 %v845, %v1138
        %1140 = vmatmul.f32.gmra.mxu0 %v933
        %v1141 = vpop.f32.mrf.mxu0
        %v1142 = vadd.f32 %v845, %v1141
        %1143 = vmatmul.f32.gmra.mxu0 %v936
        %v1144 = vpop.f32.mrf.mxu0
        %v1145 = vadd.f32 %v845, %v1144
        %1146 = vmatmul.f32.gmra.mxu0 %v939
        %v1147 = vpop.f32.mrf.mxu0
        %v1148 = vadd.f32 %v845, %v1147
        %1149 = vmatmul.f32.gmra.mxu0 %v942
        %v1150 = vpop.f32.mrf.mxu0
        %v1151 = vadd.f32 %v845, %v1150
        %1152 = vmatmul.f32.gmra.mxu0 %v945
        %v1153 = vpop.f32.mrf.mxu0
        %v1154 = vadd.f32 %v845, %v1153
        %1155 = vmatmul.f32.gmra.mxu0 %v948
        %v1156 = vpop.f32.mrf.mxu0
        %v1157 = vadd.f32 %v845, %v1156
        %1158 = vmatmul.f32.gmra.mxu0 %v951
        %v1159 = vpop.f32.mrf.mxu0
        %v1160 = vadd.f32 %v845, %v1159
        %1161 = vmatmul.f32.gmra.mxu0 %v954
        %v1162 = vpop.f32.mrf.mxu0
        %v1163 = vadd.f32 %v845, %v1162
        %1164 = vmatmul.f32.gmra.mxu0 %v957
        %v1165 = vpop.f32.mrf.mxu0
        %v1166 = vadd.f32 %v845, %v1165
        %1167 = vmatmul.f32.gmra.mxu0 %v960
        %v1168 = vpop.f32.mrf.mxu0
        %v1169 = vadd.f32 %v845, %v1168
        %1170 = vmatmul.f32.gmra.mxu0 %v963
        %v1171 = vpop.f32.mrf.mxu0
        %v1172 = vadd.f32 %v845, %v1171
        %1173 = vmatmul.f32.gmra.mxu0 %v966
        %v1174 = vpop.f32.mrf.mxu0
        %v1175 = vadd.f32 %v845, %v1174
        %1176 = vmatmul.f32.gmra.mxu0 %v969
        %v1177 = vpop.f32.mrf.mxu0
        %v1178 = vadd.f32 %v845, %v1177
        %1179 = vmatmul.f32.gmra.mxu0 %v972
        %v1180 = vpop.f32.mrf.mxu0
        %v1181 = vadd.f32 %v845, %v1180
        %1182 = vmatmul.f32.gmra.mxu0 %v975
        %v1183 = vpop.f32.mrf.mxu0
        %v1184 = vadd.f32 %v845, %v1183
        %1185 = vmatmul.f32.gmra.mxu0 %v978
        %v1186 = vpop.f32.mrf.mxu0
        %v1187 = vadd.f32 %v845, %v1186
        %1188 = vmatmul.f32.gmra.mxu0 %v981
        %v1189 = vpop.f32.mrf.mxu0
        %v1190 = vadd.f32 %v845, %v1189
        %1191 = vmatmul.f32.gmra.mxu0 %v984
        %v1192 = vpop.f32.mrf.mxu0
        %v1193 = vadd.f32 %v845, %v1192
        %1194 = vmatmul.f32.gmra.mxu0 %v987
        %v1195 = vpop.f32.mrf.mxu0
        %v1196 = vadd.f32 %v845, %v1195
        %1197 = vmatmul.f32.gmra.mxu0 %v990
        %v1198 = vpop.f32.mrf.mxu0
        %v1199 = vadd.f32 %v845, %v1198
        %1200 = vmatmul.f32.gmra.mxu0 %v993
        %v1201 = vpop.f32.mrf.mxu0
        %v1202 = vadd.f32 %v845, %v1201
        %1203 = vmatmul.f32.gmra.mxu0 %v996
        %v1204 = vpop.f32.mrf.mxu0
        %v1205 = vadd.f32 %v845, %v1204
        %1206 = vmatmul.f32.gmra.mxu0 %v999
        %v1207 = vpop.f32.mrf.mxu0
        %v1208 = vadd.f32 %v845, %v1207
        %1209 = vmatmul.f32.gmra.mxu0 %v1002
        %v1210 = vpop.f32.mrf.mxu0
        %v1211 = vadd.f32 %v845, %v1210
        %1212 = vmatmul.f32.gmra.mxu0 %v1005
        %v1213 = vpop.f32.mrf.mxu0
        %v1214 = vadd.f32 %v845, %v1213
        %1215 = vmatmul.f32.gmra.mxu0 %v1008
        %v1216 = vpop.f32.mrf.mxu0
        %v1217 = vadd.f32 %v845, %v1216
        %1218 = vmatmul.f32.gmra.mxu0 %v1011
        %v1219 = vpop.f32.mrf.mxu0
        %v1220 = vadd.f32 %v845, %v1219
        %1221 = vmatmul.f32.gmra.mxu0 %v1014
        %v1222 = vpop.f32.mrf.mxu0
        %v1223 = vadd.f32 %v845, %v1222
        %1224 = vmatmul.f32.gmra.mxu0 %v1017
        %v1225 = vpop.f32.mrf.mxu0
        %v1226 = vadd.f32 %v845, %v1225
        %1227 = vmatmul.f32.gmra.mxu0 %v1020
        %v1228 = vpop.f32.mrf.mxu0
        %v1229 = vadd.f32 %v845, %v1228
        %1230 = vmatmul.f32.gmra.mxu0 %v1023
        %v1231 = vpop.f32.mrf.mxu0
        %v1232 = vadd.f32 %v845, %v1231
        %1233 = vmatmul.f32.gmra.mxu0 %v1026
        %v1234 = vpop.f32.mrf.mxu0
        %v1235 = vadd.f32 %v845, %v1234
        %1236 = vmatmul.f32.gmra.mxu0 %v1029
        %v1237 = vpop.f32.mrf.mxu0
        %v1238 = vadd.f32 %v845, %v1237
        %1239 = vmatmul.f32.gmra.mxu0 %v1032
        %v1240 = vpop.f32.mrf.mxu0
        %v1241 = vadd.f32 %v845, %v1240
        %1242 = vmatmul.f32.gmra.mxu0 %v1035
        %v1243 = vpop.f32.mrf.mxu0
        %v1244 = vadd.f32 %v845, %v1243
        %1245 = vmatmul.f32.gmra.mxu0 %v1038
        %v1246 = vpop.f32.mrf.mxu0
        %v1247 = vadd.f32 %v845, %v1246
        %1248 = vdwg.mxu0
        %v1249 = vmax.f32 %v1058, 0.0
        %v1250 = vmax.f32 %v1061, 0.0
        %v1251 = vmax.f32 %v1064, 0.0
        %v1252 = vmax.f32 %v1067, 0.0
        %v1253 = vmax.f32 %v1070, 0.0
        %v1254 = vmax.f32 %v1073, 0.0
        %v1255 = vmax.f32 %v1076, 0.0
        %v1256 = vmax.f32 %v1079, 0.0
        %v1257 = vmax.f32 %v1082, 0.0
        %v1258 = vmax.f32 %v1085, 0.0
        %v1259 = vmax.f32 %v1088, 0.0
        %v1260 = vmax.f32 %v1091, 0.0
        %v1261 = vmax.f32 %v1094, 0.0
        %v1262 = vmax.f32 %v1097, 0.0
        %v1263 = vmax.f32 %v1100, 0.0
        %v1264 = vmax.f32 %v1103, 0.0
        %v1265 = vmax.f32 %v1106, 0.0
        %v1266 = vmax.f32 %v1109, 0.0
        %v1267 = vmax.f32 %v1112, 0.0
        %v1268 = vmax.f32 %v1115, 0.0
        %v1269 = vmax.f32 %v1118, 0.0
        %v1270 = vmax.f32 %v1121, 0.0
        %v1271 = vmax.f32 %v1124, 0.0
        %v1272 = vmax.f32 %v1127, 0.0
        %v1273 = vmax.f32 %v1130, 0.0
        %v1274 = vmax.f32 %v1133, 0.0
        %v1275 = vmax.f32 %v1136, 0.0
        %v1276 = vmax.f32 %v1139, 0.0
        %v1277 = vmax.f32 %v1142, 0.0
        %v1278 = vmax.f32 %v1145, 0.0
        %v1279 = vmax.f32 %v1148, 0.0
        %v1280 = vmax.f32 %v1151, 0.0
        %v1281 = vmax.f32 %v1154, 0.0
        %v1282 = vmax.f32 %v1157, 0.0
        %v1283 = vmax.f32 %v1160, 0.0
        %v1284 = vmax.f32 %v1163, 0.0
        %v1285 = vmax.f32 %v1166, 0.0
        %v1286 = vmax.f32 %v1169, 0.0
        %v1287 = vmax.f32 %v1172, 0.0
        %v1288 = vmax.f32 %v1175, 0.0
        %v1289 = vmax.f32 %v1178, 0.0
        %v1290 = vmax.f32 %v1181, 0.0
        %v1291 = vmax.f32 %v1184, 0.0
        %v1292 = vmax.f32 %v1187, 0.0
        %v1293 = vmax.f32 %v1190, 0.0
        %v1294 = vmax.f32 %v1193, 0.0
        %v1295 = vmax.f32 %v1196, 0.0
        %v1296 = vmax.f32 %v1199, 0.0
        %v1297 = vmax.f32 %v1202, 0.0
        %v1298 = vmax.f32 %v1205, 0.0
        %v1299 = vmax.f32 %v1208, 0.0
        %v1300 = vmax.f32 %v1211, 0.0
        %v1301 = vmax.f32 %v1214, 0.0
        %v1302 = vmax.f32 %v1217, 0.0
        %v1303 = vmax.f32 %v1220, 0.0
        %v1304 = vmax.f32 %v1223, 0.0
        %v1305 = vmax.f32 %v1226, 0.0
        %v1306 = vmax.f32 %v1229, 0.0
        %v1307 = vmax.f32 %v1232, 0.0
        %v1308 = vmax.f32 %v1235, 0.0
        %v1309 = vmax.f32 %v1238, 0.0
        %v1310 = vmax.f32 %v1241, 0.0
        %v1311 = vmax.f32 %v1244, 0.0
        %v1312 = vmax.f32 %v1247, 0.0
        %v1313 = vld [vmem:[%s5] sm:$0xff]
        %v1314 = vld [vmem:[%s5 + $0x8] sm:$0xff]
        %v1315 = vld [vmem:[%s5 + $0x10] sm:$0xff]
        %v1316 = vld [vmem:[%s5 + $0x18] sm:$0xff]
        %v1317 = vld [vmem:[%s5 + $0x20] sm:$0xff]
        %v1318 = vld [vmem:[%s5 + $0x28] sm:$0xff]
        %v1319 = vld [vmem:[%s5 + $0x30] sm:$0xff]
        %v1320 = vld [vmem:[%s5 + $0x38] sm:$0xff]
        %v1321 = vld [vmem:[%s6] sm:$0x1]
        %v1323 = vperm.slane %v1321, 0
        %v1326 = vsel %vm847, %v1249, 0
        %v1329 = vsel %vm847, %v1250, 0
        %v1332 = vsel %vm847, %v1251, 0
        %v1335 = vsel %vm847, %v1252, 0
        %v1338 = vsel %vm847, %v1253, 0
        %v1341 = vsel %vm847, %v1254, 0
        %v1344 = vsel %vm847, %v1255, 0
        %v1347 = vsel %vm847, %v1256, 0
        %v1350 = vsel %vm847, %v1257, 0
        %v1353 = vsel %vm847, %v1258, 0
        %v1356 = vsel %vm847, %v1259, 0
        %v1359 = vsel %vm847, %v1260, 0
        %v1362 = vsel %vm847, %v1261, 0
        %v1365 = vsel %vm847, %v1262, 0
        %v1368 = vsel %vm847, %v1263, 0
        %v1371 = vsel %vm847, %v1264, 0
        %v1374 = vsel %vm847, %v1265, 0
        %v1377 = vsel %vm847, %v1266, 0
        %v1380 = vsel %vm847, %v1267, 0
        %v1383 = vsel %vm847, %v1268, 0
        %v1386 = vsel %vm847, %v1269, 0
        %v1389 = vsel %vm847, %v1270, 0
        %v1392 = vsel %vm847, %v1271, 0
        %v1395 = vsel %vm847, %v1272, 0
        %v1398 = vsel %vm847, %v1273, 0
        %v1401 = vsel %vm847, %v1274, 0
        %v1404 = vsel %vm847, %v1275, 0
        %v1407 = vsel %vm847, %v1276, 0
        %v1410 = vsel %vm847, %v1277, 0
        %v1413 = vsel %vm847, %v1278, 0
        %v1416 = vsel %vm847, %v1279, 0
        %v1419 = vsel %vm847, %v1280, 0
        %v1422 = vsel %vm847, %v1281, 0
        %v1425 = vsel %vm847, %v1282, 0
        %v1428 = vsel %vm847, %v1283, 0
        %v1431 = vsel %vm847, %v1284, 0
        %v1434 = vsel %vm847, %v1285, 0
        %v1437 = vsel %vm847, %v1286, 0
        %v1440 = vsel %vm847, %v1287, 0
        %v1443 = vsel %vm847, %v1288, 0
        %v1446 = vsel %vm847, %v1289, 0
        %v1449 = vsel %vm847, %v1290, 0
        %v1452 = vsel %vm847, %v1291, 0
        %v1455 = vsel %vm847, %v1292, 0
        %v1458 = vsel %vm847, %v1293, 0
        %v1461 = vsel %vm847, %v1294, 0
        %v1464 = vsel %vm847, %v1295, 0
        %v1467 = vsel %vm847, %v1296, 0
        %v1470 = vsel %vm847, %v1297, 0
        %v1473 = vsel %vm847, %v1298, 0
        %v1476 = vsel %vm847, %v1299, 0
        %v1479 = vsel %vm847, %v1300, 0
        %v1482 = vsel %vm847, %v1301, 0
        %v1485 = vsel %vm847, %v1302, 0
        %v1488 = vsel %vm847, %v1303, 0
        %v1491 = vsel %vm847, %v1304, 0
        %v1494 = vsel %vm847, %v1305, 0
        %v1497 = vsel %vm847, %v1306, 0
        %v1500 = vsel %vm847, %v1307, 0
        %v1503 = vsel %vm847, %v1308, 0
        %v1506 = vsel %vm847, %v1309, 0
        %v1509 = vsel %vm847, %v1310, 0
        %v1512 = vsel %vm847, %v1311, 0
        %v1515 = vsel %vm847, %v1312, 0
        %1517 = vmatpush.msra.mxu0 0.0
        %1518 = vmatpush.msra.mxu0 0.0
        %1519 = vmatpush.msra.mxu0 0.0
        %1520 = vmatpush.msra.mxu0 0.0
        %1521 = vmatpush.msra.mxu0 0.0
        %1522 = vmatpush.msra.mxu0 0.0
        %1523 = vmatpush.msra.mxu0 0.0
        %1524 = vmatpush.msra.mxu0 0.0
        %1525 = vmatpush.msra.mxu0 %v1320
        %1526 = vmatpush.msra.mxu0 %v1319
        %1527 = vmatpush.msra.mxu0 %v1318
        %1528 = vmatpush.msra.mxu0 %v1317
        %1529 = vmatpush.msra.mxu0 %v1316
        %1530 = vmatpush.msra.mxu0 %v1315
        %1531 = vmatpush.msra.mxu0 %v1314
        %1532 = vmatpush.msra.mxu0 %v1313
        %1533 = vmatmul.f32.gmra.mxu0 %v1326
        %v1534 = vpop.f32.mrf.mxu0
        %v1535 = vadd.f32 %v1323, %v1534
        %1536 = vmatmul.f32.gmra.mxu0 %v1329
        %v1537 = vpop.f32.mrf.mxu0
        %v1538 = vadd.f32 %v1323, %v1537
        %1539 = vmatmul.f32.gmra.mxu0 %v1332
        %v1540 = vpop.f32.mrf.mxu0
        %v1541 = vadd.f32 %v1323, %v1540
        %1542 = vmatmul.f32.gmra.mxu0 %v1335
        %v1543 = vpop.f32.mrf.mxu0
        %v1544 = vadd.f32 %v1323, %v1543
        %1545 = vmatmul.f32.gmra.mxu0 %v1338
        %v1546 = vpop.f32.mrf.mxu0
        %v1547 = vadd.f32 %v1323, %v1546
        %1548 = vmatmul.f32.gmra.mxu0 %v1341
        %v1549 = vpop.f32.mrf.mxu0
        %v1550 = vadd.f32 %v1323, %v1549
        %1551 = vmatmul.f32.gmra.mxu0 %v1344
        %v1552 = vpop.f32.mrf.mxu0
        %v1553 = vadd.f32 %v1323, %v1552
        %1554 = vmatmul.f32.gmra.mxu0 %v1347
        %v1555 = vpop.f32.mrf.mxu0
        %v1556 = vadd.f32 %v1323, %v1555
        %1557 = vmatmul.f32.gmra.mxu0 %v1350
        %v1558 = vpop.f32.mrf.mxu0
        %v1559 = vadd.f32 %v1323, %v1558
        %1560 = vmatmul.f32.gmra.mxu0 %v1353
        %v1561 = vpop.f32.mrf.mxu0
        %v1562 = vadd.f32 %v1323, %v1561
        %1563 = vmatmul.f32.gmra.mxu0 %v1356
        %v1564 = vpop.f32.mrf.mxu0
        %v1565 = vadd.f32 %v1323, %v1564
        %1566 = vmatmul.f32.gmra.mxu0 %v1359
        %v1567 = vpop.f32.mrf.mxu0
        %v1568 = vadd.f32 %v1323, %v1567
        %1569 = vmatmul.f32.gmra.mxu0 %v1362
        %v1570 = vpop.f32.mrf.mxu0
        %v1571 = vadd.f32 %v1323, %v1570
        %1572 = vmatmul.f32.gmra.mxu0 %v1365
        %v1573 = vpop.f32.mrf.mxu0
        %v1574 = vadd.f32 %v1323, %v1573
        %1575 = vmatmul.f32.gmra.mxu0 %v1368
        %v1576 = vpop.f32.mrf.mxu0
        %v1577 = vadd.f32 %v1323, %v1576
        %1578 = vmatmul.f32.gmra.mxu0 %v1371
        %v1579 = vpop.f32.mrf.mxu0
        %v1580 = vadd.f32 %v1323, %v1579
        %1581 = vmatmul.f32.gmra.mxu0 %v1374
        %v1582 = vpop.f32.mrf.mxu0
        %v1583 = vadd.f32 %v1323, %v1582
        %1584 = vmatmul.f32.gmra.mxu0 %v1377
        %v1585 = vpop.f32.mrf.mxu0
        %v1586 = vadd.f32 %v1323, %v1585
        %1587 = vmatmul.f32.gmra.mxu0 %v1380
        %v1588 = vpop.f32.mrf.mxu0
        %v1589 = vadd.f32 %v1323, %v1588
        %1590 = vmatmul.f32.gmra.mxu0 %v1383
        %v1591 = vpop.f32.mrf.mxu0
        %v1592 = vadd.f32 %v1323, %v1591
        %1593 = vmatmul.f32.gmra.mxu0 %v1386
        %v1594 = vpop.f32.mrf.mxu0
        %v1595 = vadd.f32 %v1323, %v1594
        %1596 = vmatmul.f32.gmra.mxu0 %v1389
        %v1597 = vpop.f32.mrf.mxu0
        %v1598 = vadd.f32 %v1323, %v1597
        %1599 = vmatmul.f32.gmra.mxu0 %v1392
        %v1600 = vpop.f32.mrf.mxu0
        %v1601 = vadd.f32 %v1323, %v1600
        %1602 = vmatmul.f32.gmra.mxu0 %v1395
        %v1603 = vpop.f32.mrf.mxu0
        %v1604 = vadd.f32 %v1323, %v1603
        %1605 = vmatmul.f32.gmra.mxu0 %v1398
        %v1606 = vpop.f32.mrf.mxu0
        %v1607 = vadd.f32 %v1323, %v1606
        %1608 = vmatmul.f32.gmra.mxu0 %v1401
        %v1609 = vpop.f32.mrf.mxu0
        %v1610 = vadd.f32 %v1323, %v1609
        %1611 = vmatmul.f32.gmra.mxu0 %v1404
        %v1612 = vpop.f32.mrf.mxu0
        %v1613 = vadd.f32 %v1323, %v1612
        %1614 = vmatmul.f32.gmra.mxu0 %v1407
        %v1615 = vpop.f32.mrf.mxu0
        %v1616 = vadd.f32 %v1323, %v1615
        %1617 = vmatmul.f32.gmra.mxu0 %v1410
        %v1618 = vpop.f32.mrf.mxu0
        %v1619 = vadd.f32 %v1323, %v1618
        %1620 = vmatmul.f32.gmra.mxu0 %v1413
        %v1621 = vpop.f32.mrf.mxu0
        %v1622 = vadd.f32 %v1323, %v1621
        %1623 = vmatmul.f32.gmra.mxu0 %v1416
        %v1624 = vpop.f32.mrf.mxu0
        %v1625 = vadd.f32 %v1323, %v1624
        %1626 = vmatmul.f32.gmra.mxu0 %v1419
        %v1627 = vpop.f32.mrf.mxu0
        %v1628 = vadd.f32 %v1323, %v1627
        %1629 = vmatmul.f32.gmra.mxu0 %v1422
        %v1630 = vpop.f32.mrf.mxu0
        %v1631 = vadd.f32 %v1323, %v1630
        %1632 = vmatmul.f32.gmra.mxu0 %v1425
        %v1633 = vpop.f32.mrf.mxu0
        %v1634 = vadd.f32 %v1323, %v1633
        %1635 = vmatmul.f32.gmra.mxu0 %v1428
        %v1636 = vpop.f32.mrf.mxu0
        %v1637 = vadd.f32 %v1323, %v1636
        %1638 = vmatmul.f32.gmra.mxu0 %v1431
        %v1639 = vpop.f32.mrf.mxu0
        %v1640 = vadd.f32 %v1323, %v1639
        %1641 = vmatmul.f32.gmra.mxu0 %v1434
        %v1642 = vpop.f32.mrf.mxu0
        %v1643 = vadd.f32 %v1323, %v1642
        %1644 = vmatmul.f32.gmra.mxu0 %v1437
        %v1645 = vpop.f32.mrf.mxu0
        %v1646 = vadd.f32 %v1323, %v1645
        %1647 = vmatmul.f32.gmra.mxu0 %v1440
        %v1648 = vpop.f32.mrf.mxu0
        %v1649 = vadd.f32 %v1323, %v1648
        %1650 = vmatmul.f32.gmra.mxu0 %v1443
        %v1651 = vpop.f32.mrf.mxu0
        %v1652 = vadd.f32 %v1323, %v1651
        %1653 = vmatmul.f32.gmra.mxu0 %v1446
        %v1654 = vpop.f32.mrf.mxu0
        %v1655 = vadd.f32 %v1323, %v1654
        %1656 = vmatmul.f32.gmra.mxu0 %v1449
        %v1657 = vpop.f32.mrf.mxu0
        %v1658 = vadd.f32 %v1323, %v1657
        %1659 = vmatmul.f32.gmra.mxu0 %v1452
        %v1660 = vpop.f32.mrf.mxu0
        %v1661 = vadd.f32 %v1323, %v1660
        %1662 = vmatmul.f32.gmra.mxu0 %v1455
        %v1663 = vpop.f32.mrf.mxu0
        %v1664 = vadd.f32 %v1323, %v1663
        %1665 = vmatmul.f32.gmra.mxu0 %v1458
        %v1666 = vpop.f32.mrf.mxu0
        %v1667 = vadd.f32 %v1323, %v1666
        %1668 = vmatmul.f32.gmra.mxu0 %v1461
        %v1669 = vpop.f32.mrf.mxu0
        %v1670 = vadd.f32 %v1323, %v1669
        %1671 = vmatmul.f32.gmra.mxu0 %v1464
        %v1672 = vpop.f32.mrf.mxu0
        %v1673 = vadd.f32 %v1323, %v1672
        %1674 = vmatmul.f32.gmra.mxu0 %v1467
        %v1675 = vpop.f32.mrf.mxu0
        %v1676 = vadd.f32 %v1323, %v1675
        %1677 = vmatmul.f32.gmra.mxu0 %v1470
        %v1678 = vpop.f32.mrf.mxu0
        %v1679 = vadd.f32 %v1323, %v1678
        %1680 = vmatmul.f32.gmra.mxu0 %v1473
        %v1681 = vpop.f32.mrf.mxu0
        %v1682 = vadd.f32 %v1323, %v1681
        %1683 = vmatmul.f32.gmra.mxu0 %v1476
        %v1684 = vpop.f32.mrf.mxu0
        %v1685 = vadd.f32 %v1323, %v1684
        %1686 = vmatmul.f32.gmra.mxu0 %v1479
        %v1687 = vpop.f32.mrf.mxu0
        %v1688 = vadd.f32 %v1323, %v1687
        %1689 = vmatmul.f32.gmra.mxu0 %v1482
        %v1690 = vpop.f32.mrf.mxu0
        %v1691 = vadd.f32 %v1323, %v1690
        %1692 = vmatmul.f32.gmra.mxu0 %v1485
        %v1693 = vpop.f32.mrf.mxu0
        %v1694 = vadd.f32 %v1323, %v1693
        %1695 = vmatmul.f32.gmra.mxu0 %v1488
        %v1696 = vpop.f32.mrf.mxu0
        %v1697 = vadd.f32 %v1323, %v1696
        %1698 = vmatmul.f32.gmra.mxu0 %v1491
        %v1699 = vpop.f32.mrf.mxu0
        %v1700 = vadd.f32 %v1323, %v1699
        %1701 = vmatmul.f32.gmra.mxu0 %v1494
        %v1702 = vpop.f32.mrf.mxu0
        %v1703 = vadd.f32 %v1323, %v1702
        %1704 = vmatmul.f32.gmra.mxu0 %v1497
        %v1705 = vpop.f32.mrf.mxu0
        %v1706 = vadd.f32 %v1323, %v1705
        %1707 = vmatmul.f32.gmra.mxu0 %v1500
        %v1708 = vpop.f32.mrf.mxu0
        %v1709 = vadd.f32 %v1323, %v1708
        %1710 = vmatmul.f32.gmra.mxu0 %v1503
        %v1711 = vpop.f32.mrf.mxu0
        %v1712 = vadd.f32 %v1323, %v1711
        %1713 = vmatmul.f32.gmra.mxu0 %v1506
        %v1714 = vpop.f32.mrf.mxu0
        %v1715 = vadd.f32 %v1323, %v1714
        %1716 = vmatmul.f32.gmra.mxu0 %v1509
        %v1717 = vpop.f32.mrf.mxu0
        %v1718 = vadd.f32 %v1323, %v1717
        %1719 = vmatmul.f32.gmra.mxu0 %v1512
        %v1720 = vpop.f32.mrf.mxu0
        %v1721 = vadd.f32 %v1323, %v1720
        %1722 = vmatmul.f32.gmra.mxu0 %v1515
        %v1723 = vpop.f32.mrf.mxu0
        %v1724 = vadd.f32 %v1323, %v1723
        %1725 = vdwg.mxu0
        %vm1726 = vcmask 31744
        %1727 = vst.msk [vmem:[%s280] sm:$0xff] %vm1726, %v1535
        %1728 = vst.msk [vmem:[%s280 + $0x8] sm:$0xff] %vm1726, %v1538
        %1729 = vst.msk [vmem:[%s280 + $0x10] sm:$0xff] %vm1726, %v1541
        %1730 = vst.msk [vmem:[%s280 + $0x18] sm:$0xff] %vm1726, %v1544
        %1731 = vst.msk [vmem:[%s280 + $0x20] sm:$0xff] %vm1726, %v1547
        %1732 = vst.msk [vmem:[%s280 + $0x28] sm:$0xff] %vm1726, %v1550
        %1733 = vst.msk [vmem:[%s280 + $0x30] sm:$0xff] %vm1726, %v1553
        %1734 = vst.msk [vmem:[%s280 + $0x38] sm:$0xff] %vm1726, %v1556
        %1735 = vst.msk [vmem:[%s280 + $0x40] sm:$0xff] %vm1726, %v1559
        %1736 = vst.msk [vmem:[%s280 + $0x48] sm:$0xff] %vm1726, %v1562
        %1737 = vst.msk [vmem:[%s280 + $0x50] sm:$0xff] %vm1726, %v1565
        %1738 = vst.msk [vmem:[%s280 + $0x58] sm:$0xff] %vm1726, %v1568
        %1739 = vst.msk [vmem:[%s280 + $0x60] sm:$0xff] %vm1726, %v1571
        %1740 = vst.msk [vmem:[%s280 + $0x68] sm:$0xff] %vm1726, %v1574
        %1741 = vst.msk [vmem:[%s280 + $0x70] sm:$0xff] %vm1726, %v1577
        %1742 = vst.msk [vmem:[%s280 + $0x78] sm:$0xff] %vm1726, %v1580
        %1743 = vst.msk [vmem:[%s280 + $0x80] sm:$0xff] %vm1726, %v1583
        %1744 = vst.msk [vmem:[%s280 + $0x88] sm:$0xff] %vm1726, %v1586
        %1745 = vst.msk [vmem:[%s280 + $0x90] sm:$0xff] %vm1726, %v1589
        %1746 = vst.msk [vmem:[%s280 + $0x98] sm:$0xff] %vm1726, %v1592
        %1747 = vst.msk [vmem:[%s280 + $0xa0] sm:$0xff] %vm1726, %v1595
        %1748 = vst.msk [vmem:[%s280 + $0xa8] sm:$0xff] %vm1726, %v1598
        %1749 = vst.msk [vmem:[%s280 + $0xb0] sm:$0xff] %vm1726, %v1601
        %1750 = vst.msk [vmem:[%s280 + $0xb8] sm:$0xff] %vm1726, %v1604
        %1751 = vst.msk [vmem:[%s280 + $0xc0] sm:$0xff] %vm1726, %v1607
        %1752 = vst.msk [vmem:[%s280 + $0xc8] sm:$0xff] %vm1726, %v1610
        %1753 = vst.msk [vmem:[%s280 + $0xd0] sm:$0xff] %vm1726, %v1613
        %1754 = vst.msk [vmem:[%s280 + $0xd8] sm:$0xff] %vm1726, %v1616
        %1755 = vst.msk [vmem:[%s280 + $0xe0] sm:$0xff] %vm1726, %v1619
        %1756 = vst.msk [vmem:[%s280 + $0xe8] sm:$0xff] %vm1726, %v1622
        %1757 = vst.msk [vmem:[%s280 + $0xf0] sm:$0xff] %vm1726, %v1625
        %1758 = vst.msk [vmem:[%s280 + $0xf8] sm:$0xff] %vm1726, %v1628
        %1759 = vst.msk [vmem:[%s280 + $0x100] sm:$0xff] %vm1726, %v1631
        %1760 = vst.msk [vmem:[%s280 + $0x108] sm:$0xff] %vm1726, %v1634
        %1761 = vst.msk [vmem:[%s280 + $0x110] sm:$0xff] %vm1726, %v1637
        %1762 = vst.msk [vmem:[%s280 + $0x118] sm:$0xff] %vm1726, %v1640
        %1763 = vst.msk [vmem:[%s280 + $0x120] sm:$0xff] %vm1726, %v1643
        %1764 = vst.msk [vmem:[%s280 + $0x128] sm:$0xff] %vm1726, %v1646
        %1765 = vst.msk [vmem:[%s280 + $0x130] sm:$0xff] %vm1726, %v1649
        %1766 = vst.msk [vmem:[%s280 + $0x138] sm:$0xff] %vm1726, %v1652
        %1767 = vst.msk [vmem:[%s280 + $0x140] sm:$0xff] %vm1726, %v1655
        %1768 = vst.msk [vmem:[%s280 + $0x148] sm:$0xff] %vm1726, %v1658
        %1769 = vst.msk [vmem:[%s280 + $0x150] sm:$0xff] %vm1726, %v1661
        %1770 = vst.msk [vmem:[%s280 + $0x158] sm:$0xff] %vm1726, %v1664
        %1771 = vst.msk [vmem:[%s280 + $0x160] sm:$0xff] %vm1726, %v1667
        %1772 = vst.msk [vmem:[%s280 + $0x168] sm:$0xff] %vm1726, %v1670
        %1773 = vst.msk [vmem:[%s280 + $0x170] sm:$0xff] %vm1726, %v1673
        %1774 = vst.msk [vmem:[%s280 + $0x178] sm:$0xff] %vm1726, %v1676
        %1775 = vst.msk [vmem:[%s280 + $0x180] sm:$0xff] %vm1726, %v1679
        %1776 = vst.msk [vmem:[%s280 + $0x188] sm:$0xff] %vm1726, %v1682
        %1777 = vst.msk [vmem:[%s280 + $0x190] sm:$0xff] %vm1726, %v1685
        %1778 = vst.msk [vmem:[%s280 + $0x198] sm:$0xff] %vm1726, %v1688
        %1779 = vst.msk [vmem:[%s280 + $0x1a0] sm:$0xff] %vm1726, %v1691
        %1780 = vst.msk [vmem:[%s280 + $0x1a8] sm:$0xff] %vm1726, %v1694
        %1781 = vst.msk [vmem:[%s280 + $0x1b0] sm:$0xff] %vm1726, %v1697
        %1782 = vst.msk [vmem:[%s280 + $0x1b8] sm:$0xff] %vm1726, %v1700
        %1783 = vst.msk [vmem:[%s280 + $0x1c0] sm:$0xff] %vm1726, %v1703
        %1784 = vst.msk [vmem:[%s280 + $0x1c8] sm:$0xff] %vm1726, %v1706
        %1785 = vst.msk [vmem:[%s280 + $0x1d0] sm:$0xff] %vm1726, %v1709
        %1786 = vst.msk [vmem:[%s280 + $0x1d8] sm:$0xff] %vm1726, %v1712
        %1787 = vst.msk [vmem:[%s280 + $0x1e0] sm:$0xff] %vm1726, %v1715
        %1788 = vst.msk [vmem:[%s280 + $0x1e8] sm:$0xff] %vm1726, %v1718
        %1789 = vst.msk [vmem:[%s280 + $0x1f0] sm:$0xff] %vm1726, %v1721
        %1790 = vst.msk [vmem:[%s280 + $0x1f8] sm:$0xff] %vm1726, %v1724
        %s1791 = sand.u32 %s178, 1
        %s1792 = sand.u32 %s178, 1
        %s1793 = smul.addr %s1792, 512
        %s1794 = scalar_lea.vmem [#allocation2], %s1793
        // Predicated region
        $region49: #{tpu_custom_call.1} parent=47 // pred_check
          %p1795 = pneg %p188
        $region50: #{tpu_custom_call.1} parent=47 // pred_check_branch
          %1797 = sbr.rel (%p1795) target = $region52
        $region51: #{tpu_custom_call.1} parent=47 // pred_region
          %s1798 = smul.u32 64, %s18
          %s1799 = ssub.s32 125, %s1798
          %p1800 = scmp.lt.s32.totalorder %s1799, 64
          %s1801 = scalar_select %p1800, %s1799, 64
          %s1802 = smul.u32 8, %s1801
          %p1803 = scmp.ne.s32.totalorder 0, %s1802
          %s1804 = smul.addr %s1798, 8
          %s1805 = scalar_lea.vmem %s7, %s1804
          // Predicated region
          $region53: #{tpu_custom_call.1} parent=51 // pred_check
            %p1806 = pneg %p1803
          $region54: #{tpu_custom_call.1} parent=51 // pred_check_branch
            %1808 = sbr.rel (%p1806) target = $region56
          $region55: #{tpu_custom_call.1} parent=51 // pred_region
            // Predicated region
            $region57: #{tpu_custom_call.1} parent=55 // pred_check
              _
            $region58: #{tpu_custom_call.1} parent=55 // pred_check_branch
              %1810 = sbr.rel (0) target = $region60
            $region59: #{tpu_custom_call.1} parent=55 // pred_region
              // Predicated region
              $region79: #{tpu_custom_call.1} parent=59 // pred_check
                _
              $region80: #{tpu_custom_call.1} parent=59 // pred_check_branch
                %1922 = sbr.rel (0) target = $region82
              $region81: #{tpu_custom_call.1} parent=59 // pred_region
                %s1923 = sshrl.u32 %s1801, 5
                // While loop
                $region83: #{tpu_custom_call.1} parent=81 // loop_pre_header
                  _
                $region84: #{tpu_custom_call.1} parent=81 // loop_header
                  %s1925 = sphi 0, %s1927
                  %p1926 = scmp.ge.s32.totalorder %s1925, %s1923
                  %s1930 = sphi 0, %s1999
                  %s1931 = sphi %s1794, %s2002
                  %s1932 = sphi %s1805, %s2003
                $region85: #{tpu_custom_call.1} parent=81 // loop_header_branch
                  %1929 = sbr.rel (%p1926) target = $region89
                $region86: #{tpu_custom_call.1} parent=81 // loop_body
                  %v1933 = vld [vmem:[%s1931] sm:$0xff]
                  %1934 = vst [vmem:[%s1932] sm:$0xff] %v1933
                  %v1935 = vld [vmem:[%s1931 + $0x8] sm:$0xff]
                  %1936 = vst [vmem:[%s1932 + $0x8] sm:$0xff] %v1935
                  %v1937 = vld [vmem:[%s1931 + $0x10] sm:$0xff]
                  %1938 = vst [vmem:[%s1932 + $0x10] sm:$0xff] %v1937
                  %v1939 = vld [vmem:[%s1931 + $0x18] sm:$0xff]
                  %1940 = vst [vmem:[%s1932 + $0x18] sm:$0xff] %v1939
                  %v1941 = vld [vmem:[%s1931 + $0x20] sm:$0xff]
                  %1942 = vst [vmem:[%s1932 + $0x20] sm:$0xff] %v1941
                  %v1943 = vld [vmem:[%s1931 + $0x28] sm:$0xff]
                  %1944 = vst [vmem:[%s1932 + $0x28] sm:$0xff] %v1943
                  %v1945 = vld [vmem:[%s1931 + $0x30] sm:$0xff]
                  %1946 = vst [vmem:[%s1932 + $0x30] sm:$0xff] %v1945
                  %v1947 = vld [vmem:[%s1931 + $0x38] sm:$0xff]
                  %1948 = vst [vmem:[%s1932 + $0x38] sm:$0xff] %v1947
                  %v1949 = vld [vmem:[%s1931 + $0x40] sm:$0xff]
                  %1950 = vst [vmem:[%s1932 + $0x40] sm:$0xff] %v1949
                  %v1951 = vld [vmem:[%s1931 + $0x48] sm:$0xff]
                  %1952 = vst [vmem:[%s1932 + $0x48] sm:$0xff] %v1951
                  %v1953 = vld [vmem:[%s1931 + $0x50] sm:$0xff]
                  %1954 = vst [vmem:[%s1932 + $0x50] sm:$0xff] %v1953
                  %v1955 = vld [vmem:[%s1931 + $0x58] sm:$0xff]
                  %1956 = vst [vmem:[%s1932 + $0x58] sm:$0xff] %v1955
                  %v1957 = vld [vmem:[%s1931 + $0x60] sm:$0xff]
                  %1958 = vst [vmem:[%s1932 + $0x60] sm:$0xff] %v1957
                  %v1959 = vld [vmem:[%s1931 + $0x68] sm:$0xff]
                  %1960 = vst [vmem:[%s1932 + $0x68] sm:$0xff] %v1959
                  %v1961 = vld [vmem:[%s1931 + $0x70] sm:$0xff]
                  %1962 = vst [vmem:[%s1932 + $0x70] sm:$0xff] %v1961
                  %v1963 = vld [vmem:[%s1931 + $0x78] sm:$0xff]
                  %1964 = vst [vmem:[%s1932 + $0x78] sm:$0xff] %v1963
                  %v1965 = vld [vmem:[%s1931 + $0x80] sm:$0xff]
                  %1966 = vst [vmem:[%s1932 + $0x80] sm:$0xff] %v1965
                  %v1967 = vld [vmem:[%s1931 + $0x88] sm:$0xff]
                  %1968 = vst [vmem:[%s1932 + $0x88] sm:$0xff] %v1967
                  %v1969 = vld [vmem:[%s1931 + $0x90] sm:$0xff]
                  %1970 = vst [vmem:[%s1932 + $0x90] sm:$0xff] %v1969
                  %v1971 = vld [vmem:[%s1931 + $0x98] sm:$0xff]
                  %1972 = vst [vmem:[%s1932 + $0x98] sm:$0xff] %v1971
                  %v1973 = vld [vmem:[%s1931 + $0xa0] sm:$0xff]
                  %1974 = vst [vmem:[%s1932 + $0xa0] sm:$0xff] %v1973
                  %v1975 = vld [vmem:[%s1931 + $0xa8] sm:$0xff]
                  %1976 = vst [vmem:[%s1932 + $0xa8] sm:$0xff] %v1975
                  %v1977 = vld [vmem:[%s1931 + $0xb0] sm:$0xff]
                  %1978 = vst [vmem:[%s1932 + $0xb0] sm:$0xff] %v1977
                  %v1979 = vld [vmem:[%s1931 + $0xb8] sm:$0xff]
                  %1980 = vst [vmem:[%s1932 + $0xb8] sm:$0xff] %v1979
                  %v1981 = vld [vmem:[%s1931 + $0xc0] sm:$0xff]
                  %1982 = vst [vmem:[%s1932 + $0xc0] sm:$0xff] %v1981
                  %v1983 = vld [vmem:[%s1931 + $0xc8] sm:$0xff]
                  %1984 = vst [vmem:[%s1932 + $0xc8] sm:$0xff] %v1983
                  %v1985 = vld [vmem:[%s1931 + $0xd0] sm:$0xff]
                  %1986 = vst [vmem:[%s1932 + $0xd0] sm:$0xff] %v1985
                  %v1987 = vld [vmem:[%s1931 + $0xd8] sm:$0xff]
                  %1988 = vst [vmem:[%s1932 + $0xd8] sm:$0xff] %v1987
                  %v1989 = vld [vmem:[%s1931 + $0xe0] sm:$0xff]
                  %1990 = vst [vmem:[%s1932 + $0xe0] sm:$0xff] %v1989
                  %v1991 = vld [vmem:[%s1931 + $0xe8] sm:$0xff]
                  %1992 = vst [vmem:[%s1932 + $0xe8] sm:$0xff] %v1991
                  %v1993 = vld [vmem:[%s1931 + $0xf0] sm:$0xff]
                  %1994 = vst [vmem:[%s1932 + $0xf0] sm:$0xff] %v1993
                  %v1995 = vld [vmem:[%s1931 + $0xf8] sm:$0xff]
                  %1996 = vst [vmem:[%s1932 + $0xf8] sm:$0xff] %v1995
                  %s1997 = sadd.s32 1, %s1930
                  %p1998 = scmp.ge.s32.totalorder %s1997, %s1923
                  %s1999 = scalar_select %p1998, 0, %s1997
                  %s2000 = smul.u32 %s1999, 256
                  %s2001 = smul.u32 %s1999, 256
                  %s2002 = scalar_lea.vmem %s1794, %s2000 [#allocation2]
                  %s2003 = scalar_lea.vmem %s1805, %s2001
                $region87: #{tpu_custom_call.1} parent=81 // loop_footer
                  %s1927 = sadd.s32 %s1925, 1
                $region88: #{tpu_custom_call.1} parent=81 // loop_footer_branch
                  %1924 = sbr.rel target = $region84
                $region89: #{tpu_custom_call.1} parent=81 // loop_exit
                  _
                %s2004 = sshrl.u32 %s1801, 5
                %s2005 = sand.u32 %s1801, 31
                %s2006 = smul.u32 %s2004, 32
                %s2007 = smul.u32 8, %s2006
                %s2008 = scalar_lea.vmem %s1794, %s2007 [#allocation2]
                %s2009 = smul.u32 8, %s2006
                %s2010 = scalar_lea.vmem %s1805, %s2009
                // While loop
                $region90: #{tpu_custom_call.1} parent=81 // loop_pre_header
                  _
                $region91: #{tpu_custom_call.1} parent=81 // loop_header
                  %s2012 = sphi 0, %s2014
                  %p2013 = scmp.ge.s32.totalorder %s2012, %s2005
                  %s2017 = sphi 0, %s2024
                  %s2018 = sphi %s2008, %s2027
                  %s2019 = sphi %s2010, %s2028
                $region92: #{tpu_custom_call.1} parent=81 // loop_header_branch
                  %2016 = sbr.rel (%p2013) target = $region96
                $region93: #{tpu_custom_call.1} parent=81 // loop_body
                  %v2020 = vld [vmem:[%s2018] sm:$0xff]
                  %2021 = vst [vmem:[%s2019] sm:$0xff] %v2020
                  %s2022 = sadd.s32 1, %s2017
                  %p2023 = scmp.ge.s32.totalorder %s2022, %s2005
                  %s2024 = scalar_select %p2023, 0, %s2022
                  %s2025 = smul.u32 %s2024, 8
                  %s2026 = smul.u32 %s2024, 8
                  %s2027 = scalar_lea.vmem %s2008, %s2025 [#allocation2]
                  %s2028 = scalar_lea.vmem %s2010, %s2026
                $region94: #{tpu_custom_call.1} parent=81 // loop_footer
                  %s2014 = sadd.s32 %s2012, 1
                $region95: #{tpu_custom_call.1} parent=81 // loop_footer_branch
                  %2011 = sbr.rel target = $region91
                $region96: #{tpu_custom_call.1} parent=81 // loop_exit
                  _
              $region82: #{tpu_custom_call.1} parent=59 // pred_fallthru
                _
              // Predicated region
              $region97: #{tpu_custom_call.1} parent=59 // pred_check
                _
              $region98: #{tpu_custom_call.1} parent=59 // pred_check_branch
                %2030 = sbr.rel target = $region100
              $region99: #{tpu_custom_call.1} parent=59 // pred_region
                _
              $region100: #{tpu_custom_call.1} parent=59 // pred_fallthru
                _
            $region60: #{tpu_custom_call.1} parent=55 // pred_fallthru
              _
            // Predicated region
            $region61: #{tpu_custom_call.1} parent=55 // pred_check
              _
            $region62: #{tpu_custom_call.1} parent=55 // pred_check_branch
              %1812 = sbr.rel target = $region64
            $region63: #{tpu_custom_call.1} parent=55 // pred_region
              %s1814 = ssub.s32 256, 1
              %s1815 = sshrl.u32 %s1801, 5
              // While loop
              $region65: #{tpu_custom_call.1} parent=63 // loop_pre_header
                _
              $region66: #{tpu_custom_call.1} parent=63 // loop_header
                %s1817 = sphi 0, %s1819
                %p1818 = scmp.ge.s32.totalorder %s1817, %s1815
                %s1822 = sphi 0, %s1891
                %s1823 = sphi %s1794, %s1894
                %s1824 = sphi %s1805, %s1895
              $region67: #{tpu_custom_call.1} parent=63 // loop_header_branch
                %1821 = sbr.rel (%p1818) target = $region71
              $region68: #{tpu_custom_call.1} parent=63 // loop_body
                %v1825 = vld [vmem:[%s1823] sm:%s1814]
                %1826 = vst [vmem:[%s1824] sm:%s1814] %v1825
                %v1827 = vld [vmem:[%s1823 + $0x8] sm:%s1814]
                %1828 = vst [vmem:[%s1824 + $0x8] sm:%s1814] %v1827
                %v1829 = vld [vmem:[%s1823 + $0x10] sm:%s1814]
                %1830 = vst [vmem:[%s1824 + $0x10] sm:%s1814] %v1829
                %v1831 = vld [vmem:[%s1823 + $0x18] sm:%s1814]
                %1832 = vst [vmem:[%s1824 + $0x18] sm:%s1814] %v1831
                %v1833 = vld [vmem:[%s1823 + $0x20] sm:%s1814]
                %1834 = vst [vmem:[%s1824 + $0x20] sm:%s1814] %v1833
                %v1835 = vld [vmem:[%s1823 + $0x28] sm:%s1814]
                %1836 = vst [vmem:[%s1824 + $0x28] sm:%s1814] %v1835
                %v1837 = vld [vmem:[%s1823 + $0x30] sm:%s1814]
                %1838 = vst [vmem:[%s1824 + $0x30] sm:%s1814] %v1837
                %v1839 = vld [vmem:[%s1823 + $0x38] sm:%s1814]
                %1840 = vst [vmem:[%s1824 + $0x38] sm:%s1814] %v1839
                %v1841 = vld [vmem:[%s1823 + $0x40] sm:%s1814]
                %1842 = vst [vmem:[%s1824 + $0x40] sm:%s1814] %v1841
                %v1843 = vld [vmem:[%s1823 + $0x48] sm:%s1814]
                %1844 = vst [vmem:[%s1824 + $0x48] sm:%s1814] %v1843
                %v1845 = vld [vmem:[%s1823 + $0x50] sm:%s1814]
                %1846 = vst [vmem:[%s1824 + $0x50] sm:%s1814] %v1845
                %v1847 = vld [vmem:[%s1823 + $0x58] sm:%s1814]
                %1848 = vst [vmem:[%s1824 + $0x58] sm:%s1814] %v1847
                %v1849 = vld [vmem:[%s1823 + $0x60] sm:%s1814]
                %1850 = vst [vmem:[%s1824 + $0x60] sm:%s1814] %v1849
                %v1851 = vld [vmem:[%s1823 + $0x68] sm:%s1814]
                %1852 = vst [vmem:[%s1824 + $0x68] sm:%s1814] %v1851
                %v1853 = vld [vmem:[%s1823 + $0x70] sm:%s1814]
                %1854 = vst [vmem:[%s1824 + $0x70] sm:%s1814] %v1853
                %v1855 = vld [vmem:[%s1823 + $0x78] sm:%s1814]
                %1856 = vst [vmem:[%s1824 + $0x78] sm:%s1814] %v1855
                %v1857 = vld [vmem:[%s1823 + $0x80] sm:%s1814]
                %1858 = vst [vmem:[%s1824 + $0x80] sm:%s1814] %v1857
                %v1859 = vld [vmem:[%s1823 + $0x88] sm:%s1814]
                %1860 = vst [vmem:[%s1824 + $0x88] sm:%s1814] %v1859
                %v1861 = vld [vmem:[%s1823 + $0x90] sm:%s1814]
                %1862 = vst [vmem:[%s1824 + $0x90] sm:%s1814] %v1861
                %v1863 = vld [vmem:[%s1823 + $0x98] sm:%s1814]
                %1864 = vst [vmem:[%s1824 + $0x98] sm:%s1814] %v1863
                %v1865 = vld [vmem:[%s1823 + $0xa0] sm:%s1814]
                %1866 = vst [vmem:[%s1824 + $0xa0] sm:%s1814] %v1865
                %v1867 = vld [vmem:[%s1823 + $0xa8] sm:%s1814]
                %1868 = vst [vmem:[%s1824 + $0xa8] sm:%s1814] %v1867
                %v1869 = vld [vmem:[%s1823 + $0xb0] sm:%s1814]
                %1870 = vst [vmem:[%s1824 + $0xb0] sm:%s1814] %v1869
                %v1871 = vld [vmem:[%s1823 + $0xb8] sm:%s1814]
                %1872 = vst [vmem:[%s1824 + $0xb8] sm:%s1814] %v1871
                %v1873 = vld [vmem:[%s1823 + $0xc0] sm:%s1814]
                %1874 = vst [vmem:[%s1824 + $0xc0] sm:%s1814] %v1873
                %v1875 = vld [vmem:[%s1823 + $0xc8] sm:%s1814]
                %1876 = vst [vmem:[%s1824 + $0xc8] sm:%s1814] %v1875
                %v1877 = vld [vmem:[%s1823 + $0xd0] sm:%s1814]
                %1878 = vst [vmem:[%s1824 + $0xd0] sm:%s1814] %v1877
                %v1879 = vld [vmem:[%s1823 + $0xd8] sm:%s1814]
                %1880 = vst [vmem:[%s1824 + $0xd8] sm:%s1814] %v1879
                %v1881 = vld [vmem:[%s1823 + $0xe0] sm:%s1814]
                %1882 = vst [vmem:[%s1824 + $0xe0] sm:%s1814] %v1881
                %v1883 = vld [vmem:[%s1823 + $0xe8] sm:%s1814]
                %1884 = vst [vmem:[%s1824 + $0xe8] sm:%s1814] %v1883
                %v1885 = vld [vmem:[%s1823 + $0xf0] sm:%s1814]
                %1886 = vst [vmem:[%s1824 + $0xf0] sm:%s1814] %v1885
                %v1887 = vld [vmem:[%s1823 + $0xf8] sm:%s1814]
                %1888 = vst [vmem:[%s1824 + $0xf8] sm:%s1814] %v1887
                %s1889 = sadd.s32 1, %s1822
                %p1890 = scmp.ge.s32.totalorder %s1889, %s1815
                %s1891 = scalar_select %p1890, 0, %s1889
                %s1892 = smul.u32 %s1891, 256
                %s1893 = smul.u32 %s1891, 256
                %s1894 = scalar_lea.vmem %s1794, %s1892 [#allocation2]
                %s1895 = scalar_lea.vmem %s1805, %s1893
              $region69: #{tpu_custom_call.1} parent=63 // loop_footer
                %s1819 = sadd.s32 %s1817, 1
              $region70: #{tpu_custom_call.1} parent=63 // loop_footer_branch
                %1816 = sbr.rel target = $region66
              $region71: #{tpu_custom_call.1} parent=63 // loop_exit
                _
              %s1896 = sshrl.u32 %s1801, 5
              %s1897 = sand.u32 %s1801, 31
              %s1898 = smul.u32 %s1896, 32
              %s1899 = smul.u32 8, %s1898
              %s1900 = scalar_lea.vmem %s1794, %s1899 [#allocation2]
              %s1901 = smul.u32 8, %s1898
              %s1902 = scalar_lea.vmem %s1805, %s1901
              // While loop
              $region72: #{tpu_custom_call.1} parent=63 // loop_pre_header
                _
              $region73: #{tpu_custom_call.1} parent=63 // loop_header
                %s1904 = sphi 0, %s1906
                %p1905 = scmp.ge.s32.totalorder %s1904, %s1897
                %s1909 = sphi 0, %s1916
                %s1910 = sphi %s1900, %s1919
                %s1911 = sphi %s1902, %s1920
              $region74: #{tpu_custom_call.1} parent=63 // loop_header_branch
                %1908 = sbr.rel (%p1905) target = $region78
              $region75: #{tpu_custom_call.1} parent=63 // loop_body
                %v1912 = vld [vmem:[%s1910] sm:%s1814]
                %1913 = vst [vmem:[%s1911] sm:%s1814] %v1912
                %s1914 = sadd.s32 1, %s1909
                %p1915 = scmp.ge.s32.totalorder %s1914, %s1897
                %s1916 = scalar_select %p1915, 0, %s1914
                %s1917 = smul.u32 %s1916, 8
                %s1918 = smul.u32 %s1916, 8
                %s1919 = scalar_lea.vmem %s1900, %s1917 [#allocation2]
                %s1920 = scalar_lea.vmem %s1902, %s1918
              $region76: #{tpu_custom_call.1} parent=63 // loop_footer
                %s1906 = sadd.s32 %s1904, 1
              $region77: #{tpu_custom_call.1} parent=63 // loop_footer_branch
                %1903 = sbr.rel target = $region73
              $region78: #{tpu_custom_call.1} parent=63 // loop_exit
                _
            $region64: #{tpu_custom_call.1} parent=55 // pred_fallthru
              _
          $region56: #{tpu_custom_call.1} parent=51 // pred_fallthru
            _
          %2031 = vnop
        $region52: #{tpu_custom_call.1} parent=47 // pred_fallthru
          _
      $region48: #{tpu_custom_call.1} parent=5 // pred_fallthru
        _
      %p2032 = scmp.le.s32.totalorder 2, %s13
      // Predicated region
      $region101: #{tpu_custom_call.1} parent=5 // pred_check
        %p2033 = pneg %p2032
      $region102: #{tpu_custom_call.1} parent=5 // pred_check_branch
        %2035 = sbr.rel (%p2033) target = $region104
      $region103: #{tpu_custom_call.1} parent=5 // pred_region
        %s2036 = ssub.s32 %s13, 2
        // Predicated region
        $region105: #{tpu_custom_call.1} parent=103 // pred_check
          %p2037 = pneg %p194
        $region106: #{tpu_custom_call.1} parent=103 // pred_check_branch
          %2039 = sbr.rel (%p2037) target = $region108
        $region107: #{tpu_custom_call.1} parent=103 // pred_region
          %s2040 = sand.u32 %s179, 1
          %s2041 = sand.u32 %s179, 1
          %s2042 = smul.addr %s2041, 512
          %s2043 = scalar_lea.vmem [#allocation2], %s2042
        $region108: #{tpu_custom_call.1} parent=103 // pred_fallthru
          _
      $region104: #{tpu_custom_call.1} parent=5 // pred_fallthru
        _
    $region6: #{tpu_custom_call.1} parent=1 // loop_footer
      %s17 = sadd.s32 1, %s13
    $region7: #{tpu_custom_call.1} parent=1 // loop_footer_branch
      %12 = sbr.rel target = $region3
    $region8: #{tpu_custom_call.1} parent=1 // loop_exit
      _

</llo_original>
